<compile_context>
chip_gen: v6e
topology: v6e:2x2x1
jax: 0.10.0
libtpu: 0.0.40
codegen_flags: <defaults>
</compile_context>

<pallas_src>
import functools

import jax
import jax.numpy as jnp
from jax import lax
from jax.experimental import pallas as pl
from jax.experimental.pallas import tpu as pltpu

# ---------------- model sizes (module defaults, small problem sizes) ----------
Z_DIM = 128       # z_dim
POINT_DIM = 3     # point_dim
HIDDEN = 128      # hidden_size
N_BLOCKS = 5      # block0 .. block4
LAST_SIG = False  # module default
LEAKY = False     # module default -> ReLU activation

B = 2             # batch
T = 128           # number of query points per batch element

_LANE = 128


def _actvn(x):
    if LEAKY:
        return jnp.where(x > 0, x, 0.2 * x)
    return jnp.maximum(x, 0.0)


def _elementwise_dtype():
    """bf16 elementwise on v6e/v7x (bf16 VALU); f32 on older generations."""
    try:
        kind = jax.devices()[0].device_kind.lower()
    except Exception:
        return jnp.bfloat16
    if any(g in kind for g in ("v2", "v3", "v4", "v5")):
        return jnp.float32
    return jnp.bfloat16


# --------------------------------- kernel ------------------------------------
def _decoder_kernel(paug_ref, waug_ref,
                    w0_ref, b0_ref,      # (5, H, H) bf16, (5, 1, H) f32
                    w1_ref, b1_ref,      # (5, H, H) bf16, (5, 1, H) f32
                    wo_ref, bo_ref,      # (H, 128) bf16 (lane 0 = fc_out.w), (1, 1) f32
                    out_ref,             # (tile, 1) f32
                    *, elem_dtype):
    # fc_p + fc_z + both biases folded into one small f32 MXU pass:
    #   p_aug = [p | onehot(batch)],  w_aug = [wp ; bp + fc_z(z)]
    net = jnp.dot(paug_ref[...], waug_ref[...],
                  preferred_element_type=jnp.float32)            # (tile, H) f32

    def block(i, net):
        a0 = _actvn(net).astype(jnp.bfloat16)
        h = (jnp.dot(a0, w0_ref[i], preferred_element_type=jnp.float32)
             + b0_ref[i]).astype(elem_dtype)                     # bf16 on v6e/v7x
        a1 = _actvn(h).astype(jnp.bfloat16)
        dx = jnp.dot(a1, w1_ref[i], preferred_element_type=jnp.float32) + b1_ref[i]
        return net + dx                                          # residual stays f32

    # Rolled loop + dynamic leading-axis weight indexing bounds live ranges
    # (avoids vreg spills of the fully unrolled 10-matmul chain).
    net = lax.fori_loop(0, w0_ref.shape[0], block, net)

    # fc_out on the (otherwise idle) MXU; lane 0 of wo_ref holds fc_out.weight.
    h = _actvn(net).astype(jnp.bfloat16)
    o = jnp.dot(h, wo_ref[...], preferred_element_type=jnp.float32)   # (tile, 128)
    out = o[:, 0:1] + bo_ref[...]                                     # (tile, 1)
    if LAST_SIG:
        out = jax.nn.sigmoid(out)
    out_ref[...] = out


# -------------------------------- wrapper ------------------------------------
def prepare_params(params):
    """One-time conversion (call OUTSIDE jit) of the f32 (in,out)-layout params
    into the kernel's resident layout: bf16 stacked resnet weights, (1, H) bias
    rows, and a lane-padded (H, 128) fc_out weight (weight in lane 0)."""
    wp, bp, wz, bz, w0s, b0s, w1s, b1s, wo, bo = params
    h = wp.shape[1]
    wo_pad = (jnp.zeros((h, _LANE), jnp.float32)
              .at[:, 0].set(wo[0])
              .astype(jnp.bfloat16))
    return dict(
        wp=wp, bp=bp, wz=wz, bz=bz,
        w0=w0s.astype(jnp.bfloat16), b0=b0s.reshape(-1, 1, h),
        w1=w1s.astype(jnp.bfloat16), b1=b1s.reshape(-1, 1, h),
        wo=wo_pad, bo=bo,
    )


def _row_tile(m):
    # Single step for small/overhead-bound sizes; tile the row axis (marked
    # "parallel" so v7x can shard it across its two TensorCores) when the
    # point count grows.  Tiles stay well under v7x's 64 MiB VMEM.
    if m <= 2048:
        return m
    for t in (4096, 2048, 1024, 512, 256, 128):
        if m % t == 0:
            return t
    return m


@functools.partial(jax.jit, static_argnames=("elem_dtype",))
def _decoder_forward(p, z, prep, *, elem_dtype):
    wp, bp, wz, bz = prep["wp"], prep["bp"], prep["wz"], prep["bz"]
    bb, tt, dd = p.shape
    m = bb * tt
    hh = wp.shape[1]
    assert m % 8 == 0, "flattened row count must be a sublane multiple"

    # Hoisted fc_z (M == batch degenerate matmul) + augmented projection weight:
    # rows 0..D-1 hold fc_p.weight, row D+b holds fc_p.bias + fc_z(z_b).
    net_z = z @ wz + bz                                    # (B, H) f32
    k_aug = dd + bb
    k_pad = max(8, -(-k_aug // 8) * 8)                     # sublane-align K
    w_aug = (jnp.zeros((k_pad, hh), jnp.float32)
             .at[:dd].set(wp)
             .at[dd:k_aug].set(bp + net_z))
    # One-hot batch selector; shape-only -> constant-folded at compile time.
    onehot = jnp.repeat(jnp.eye(bb, k_pad - dd, dtype=p.dtype), tt, axis=0)
    p_aug = jnp.concatenate([p.reshape(m, dd), onehot], axis=1)   # (M, k_pad)

    tile = _row_tile(m)
    grid = (m // tile,)
    full = lambda a: pl.BlockSpec(a.shape, lambda i: (0,) * a.ndim)

    out = pl.pallas_call(
        functools.partial(_decoder_kernel, elem_dtype=elem_dtype),
        out_shape=jax.ShapeDtypeStruct((m, 1), jnp.float32),
        grid_spec=pltpu.PrefetchScalarGridSpec(
            num_scalar_prefetch=0,
            grid=grid,
            in_specs=[
                pl.BlockSpec((tile, k_pad), lambda i: (i, 0)),    # p_aug row tile
                full(w_aug),
                full(prep["w0"]), full(prep["b0"]),
                full(prep["w1"]), full(prep["b1"]),
                full(prep["wo"]), full(prep["bo"]),
            ],
            out_specs=pl.BlockSpec((tile, 1), lambda i: (i, 0)),
        ),
        compiler_params=pltpu.CompilerParams(
            dimension_semantics=("parallel",)),
    )(p_aug, w_aug, prep["w0"], prep["b0"], prep["w1"], prep["b1"],
      prep["wo"], prep["bo"])
    return out.reshape(bb, tt)


def occ_simple_decoder(p, z, prep, elem_dtype=None):
    """p: (B, T, D) f32, z: (B, Z) f32, prep: prepare_params(...) -> (B, T) f32."""
    if elem_dtype is None:
        elem_dtype = _elementwise_dtype()
    return _decoder_forward(p, z, prep, elem_dtype=elem_dtype)


# ----------------------------- params / reference ----------------------------
def init_params(key):
    """Deterministic synthetic parameters.  torch Linear stores W as (out, in);
    here we keep the transposed (in, out) layout used by the kernel (fc_out is
    kept as a (1, H) row, which is the native torch layout)."""
    ks = jax.random.split(key, 16)
    s = 0.05
    wp = jax.random.normal(ks[0], (POINT_DIM, HIDDEN), jnp.float32) * s
    bp = jax.random.normal(ks[1], (1, HIDDEN), jnp.float32) * s
    wz = jax.random.normal(ks[2], (Z_DIM, HIDDEN), jnp.float32) * s
    bz = jax.random.normal(ks[3], (1, HIDDEN), jnp.float32) * s
    w0s = jax.random.normal(ks[4], (N_BLOCKS, HIDDEN, HIDDEN), jnp.float32) * s
    b0s = jax.random.normal(ks[5], (N_BLOCKS, HIDDEN), jnp.float32) * s
    # NOTE: torch init zeros fc_1.weight; random values here exercise the same math.
    w1s = jax.random.normal(ks[6], (N_BLOCKS, HIDDEN, HIDDEN), jnp.float32) * s
    b1s = jax.random.normal(ks[7], (N_BLOCKS, HIDDEN), jnp.float32) * s
    wo = jax.random.normal(ks[8], (1, HIDDEN), jnp.float32) * s
    bo = jax.random.normal(ks[9], (1, 1), jnp.float32) * s
    return (wp, bp, wz, bz, w0s, b0s, w1s, b1s, wo, bo)


def reference_f32(p, z, params):
    """Pure-f32 JAX reference mirroring the PyTorch forward pass."""
    wp, bp, wz, bz, w0s, b0s, w1s, b1s, wo, bo = params
    act = (lambda x: jnp.where(x > 0, x, 0.2 * x)) if LEAKY else jax.nn.relu
    net = p @ wp + bp + (z @ wz + bz)[:, None, :]
    for i in range(w0s.shape[0]):
        h = act(net) @ w0s[i] + b0s[i]
        dx = act(h) @ w1s[i] + b1s[i]
        net = net + dx
    out = jnp.sum(act(net) * wo, axis=-1) + bo[0, 0]
    if LAST_SIG:
        out = jax.nn.sigmoid(out)
    return out


def reference_mixed(p, z, params, elem_dtype):
    """Mirrors the kernel's mixed-precision math (bf16 weights / f32 accum,
    bf16 or f32 elementwise intermediates) in plain JAX."""
    wp, bp, wz, bz, w0s, b0s, w1s, b1s, wo, bo = params
    act = (lambda x: jnp.where(x > 0, x, 0.2 * x)) if LEAKY else jax.nn.relu
    w0b, w1b = w0s.astype(jnp.bfloat16), w1s.astype(jnp.bfloat16)
    wob = wo[0].astype(jnp.bfloat16)[:, None]                      # (H, 1)
    net = (p @ wp + bp + (z @ wz + bz)[:, None, :]).astype(jnp.float32)
    for i in range(w0s.shape[0]):
        a0 = act(net).astype(jnp.bfloat16)
        h = (jnp.dot(a0, w0b[i], preferred_element_type=jnp.float32)
             + b0s[i]).astype(elem_dtype)
        a1 = act(h).astype(jnp.bfloat16)
        dx = jnp.dot(a1, w1b[i], preferred_element_type=jnp.float32) + b1s[i]
        net = net + dx
    h = act(net).astype(jnp.bfloat16)
    out = jnp.dot(h, wob, preferred_element_type=jnp.float32)[..., 0] + bo[0, 0]
    if LAST_SIG:
        out = jax.nn.sigmoid(out)
    return out


if __name__ == "__main__":
    key = jax.random.PRNGKey(0)
    kp, kz, kw = jax.random.split(key, 3)
    p = jax.random.normal(kp, (B, T, POINT_DIM), jnp.float32)
    z = jax.random.normal(kz, (B, Z_DIM), jnp.float32)
    params = init_params(kw)

    elem_dtype = _elementwise_dtype()
    prep = prepare_params(params)          # one-time layout/bf16 prep (outside jit)

    out = occ_simple_decoder(p, z, prep, elem_dtype)
    out = jax.block_until_ready(out)
    assert out.shape == (B, T), out.shape

    # Tight check against a reference mirroring the kernel's mixed precision.
    ref_m = reference_mixed(p, z, params, elem_dtype)
    assert jnp.allclose(out, ref_m, atol=2e-2, rtol=2e-2), (
        float(jnp.max(jnp.abs(out - ref_m))))

    # Loose semantic check against the pure-f32 module reference
    # (bf16 resnet weights / activations => relaxed tolerance).
    ref_f = reference_f32(p, z, params)
    assert jnp.allclose(out, ref_f, atol=5e-2, rtol=5e-2), (
        float(jnp.max(jnp.abs(out - ref_f))))

    print("KERNEL_OK")
</pallas_src>

<mosaic_0001>
module attributes {stable_mosaic.version = 11 : i64} {
  func.func @_decoder_kernel(%arg0: i32, %arg1: memref<256x8xf32, #tpu.memory_space<vmem>>, %arg2: memref<8x128xf32, #tpu.memory_space<vmem>>, %arg3: memref<5x128x128xbf16, #tpu.memory_space<vmem>>, %arg4: memref<5x1x128xf32, #tpu.memory_space<vmem>>, %arg5: memref<5x128x128xbf16, #tpu.memory_space<vmem>>, %arg6: memref<5x1x128xf32, #tpu.memory_space<vmem>>, %arg7: memref<128x128xbf16, #tpu.memory_space<vmem>>, %arg8: memref<1x1xf32, #tpu.memory_space<vmem>>, %arg9: memref<256x1xf32, #tpu.memory_space<vmem>>) attributes {dimension_semantics = [#tpu.dimension_semantics<parallel>], iteration_bounds = array<i64: 1>, scalar_prefetch = 0 : i64, scratch_operands = 0 : i64, tpu.core_type = #tpu.core_type<tc>, window_params = [{transform_indices = @transform_0, window_bounds = array<i64: 256, 8>}, {pipeline_mode = #tpu.pipeline_mode<synchronous>, transform_indices = @transform_1, window_bounds = array<i64: 8, 128>}, {pipeline_mode = #tpu.pipeline_mode<synchronous>, transform_indices = @transform_2, window_bounds = array<i64: 5, 128, 128>}, {pipeline_mode = #tpu.pipeline_mode<synchronous>, transform_indices = @transform_3, window_bounds = array<i64: 5, 1, 128>}, {pipeline_mode = #tpu.pipeline_mode<synchronous>, transform_indices = @transform_4, window_bounds = array<i64: 5, 128, 128>}, {pipeline_mode = #tpu.pipeline_mode<synchronous>, transform_indices = @transform_5, window_bounds = array<i64: 5, 1, 128>}, {pipeline_mode = #tpu.pipeline_mode<synchronous>, transform_indices = @transform_6, window_bounds = array<i64: 128, 128>}, {pipeline_mode = #tpu.pipeline_mode<synchronous>, transform_indices = @transform_7, window_bounds = array<i64: 1, 1>}, {transform_indices = @transform_8, window_bounds = array<i64: 256, 1>}]} {
    %c0 = arith.constant 0 : index
    %c0_0 = arith.constant 0 : index
    %0 = vector.load %arg1[%c0, %c0_0] : memref<256x8xf32, #tpu.memory_space<vmem>>, vector<256x8xf32>
    %c0_1 = arith.constant 0 : index
    %c0_2 = arith.constant 0 : index
    %1 = vector.load %arg2[%c0_1, %c0_2] : memref<8x128xf32, #tpu.memory_space<vmem>>, vector<8x128xf32>
    %cst = arith.constant dense<0.000000e+00> : vector<256x128xf32>
    %2 = tpu.matmul %0, %1, %cst {dimension_numbers = #tpu.dot_dimension_numbers<[1], [0], [0], [1], [0, 0, 1, 1], [], []>} : vector<256x8xf32>, vector<8x128xf32>, vector<256x128xf32> -> vector<256x128xf32>
    %c0_i32 = arith.constant 0 : i32
    %c5_i32 = arith.constant 5 : i32
    %3 = arith.addi %c0_i32, %c5_i32 : i32
    %c1_i32 = arith.constant 1 : i32
    %4 = scf.for %arg10 = %c0_i32 to %3 step %c1_i32 iter_args(%arg11 = %2) -> (vector<256x128xf32>)  : i32 {
      %cst_12 = arith.constant 0.000000e+00 : f32
      %15 = vector.broadcast %cst_12 : f32 to vector<256x128xf32>
      %16 = arith.maximumf %arg11, %15 : vector<256x128xf32>
      %17 = arith.truncf %16 : vector<256x128xf32> to vector<256x128xbf16>
      %18 = arith.index_cast %arg10 : i32 to index
      %c0_13 = arith.constant 0 : index
      %c0_14 = arith.constant 0 : index
      %19 = vector.load %arg3[%18, %c0_13, %c0_14] : memref<5x128x128xbf16, #tpu.memory_space<vmem>>, vector<1x128x128xbf16>
      %20 = vector.shape_cast %19 : vector<1x128x128xbf16> to vector<128x128xbf16>
      %cst_15 = arith.constant dense<0.000000e+00> : vector<256x128xf32>
      %21 = tpu.matmul %17, %20, %cst_15 {dimension_numbers = #tpu.dot_dimension_numbers<[1], [0], [0], [1], [0, 0, 1, 1], [], []>} : vector<256x128xbf16>, vector<128x128xbf16>, vector<256x128xf32> -> vector<256x128xf32>
      %22 = arith.index_cast %arg10 : i32 to index
      %c0_16 = arith.constant 0 : index
      %c0_17 = arith.constant 0 : index
      %23 = vector.load %arg4[%22, %c0_16, %c0_17] : memref<5x1x128xf32, #tpu.memory_space<vmem>>, vector<1x1x128xf32>
      %24 = vector.shape_cast %23 : vector<1x1x128xf32> to vector<1x128xf32>
      %25 = vector.broadcast %24 : vector<1x128xf32> to vector<256x128xf32>
      %26 = arith.addf %21, %25 : vector<256x128xf32>
      %27 = arith.truncf %26 : vector<256x128xf32> to vector<256x128xbf16>
      %cst_18 = arith.constant 0.000000e+00 : bf16
      %28 = vector.broadcast %cst_18 : bf16 to vector<256x128xbf16>
      %29 = arith.maximumf %27, %28 : vector<256x128xbf16>
      %30 = arith.index_cast %arg10 : i32 to index
      %c0_19 = arith.constant 0 : index
      %c0_20 = arith.constant 0 : index
      %31 = vector.load %arg5[%30, %c0_19, %c0_20] : memref<5x128x128xbf16, #tpu.memory_space<vmem>>, vector<1x128x128xbf16>
      %32 = vector.shape_cast %31 : vector<1x128x128xbf16> to vector<128x128xbf16>
      %cst_21 = arith.constant dense<0.000000e+00> : vector<256x128xf32>
      %33 = tpu.matmul %29, %32, %cst_21 {dimension_numbers = #tpu.dot_dimension_numbers<[1], [0], [0], [1], [0, 0, 1, 1], [], []>} : vector<256x128xbf16>, vector<128x128xbf16>, vector<256x128xf32> -> vector<256x128xf32>
      %34 = arith.index_cast %arg10 : i32 to index
      %c0_22 = arith.constant 0 : index
      %c0_23 = arith.constant 0 : index
      %35 = vector.load %arg6[%34, %c0_22, %c0_23] : memref<5x1x128xf32, #tpu.memory_space<vmem>>, vector<1x1x128xf32>
      %36 = vector.shape_cast %35 : vector<1x1x128xf32> to vector<1x128xf32>
      %37 = vector.broadcast %36 : vector<1x128xf32> to vector<256x128xf32>
      %38 = arith.addf %33, %37 : vector<256x128xf32>
      %39 = arith.addf %arg11, %38 : vector<256x128xf32>
      scf.yield %39 : vector<256x128xf32>
    }
    %c5_i32_3 = arith.constant 5 : i32
    %cst_4 = arith.constant 0.000000e+00 : f32
    %5 = vector.broadcast %cst_4 : f32 to vector<256x128xf32>
    %6 = arith.maximumf %4, %5 : vector<256x128xf32>
    %7 = arith.truncf %6 : vector<256x128xf32> to vector<256x128xbf16>
    %c0_5 = arith.constant 0 : index
    %c0_6 = arith.constant 0 : index
    %8 = vector.load %arg7[%c0_5, %c0_6] : memref<128x128xbf16, #tpu.memory_space<vmem>>, vector<128x128xbf16>
    %cst_7 = arith.constant dense<0.000000e+00> : vector<256x128xf32>
    %9 = tpu.matmul %7, %8, %cst_7 {dimension_numbers = #tpu.dot_dimension_numbers<[1], [0], [0], [1], [0, 0, 1, 1], [], []>} : vector<256x128xbf16>, vector<128x128xbf16>, vector<256x128xf32> -> vector<256x128xf32>
    %10 = vector.extract_strided_slice %9 {offsets = [0, 0], sizes = [256, 1], strides = [1, 1]} : vector<256x128xf32> to vector<256x1xf32>
    %c0_8 = arith.constant 0 : index
    %c0_9 = arith.constant 0 : index
    %11 = vector.load %arg8[%c0_8, %c0_9] : memref<1x1xf32, #tpu.memory_space<vmem>>, vector<1x1xf32>
    %12 = vector.broadcast %11 : vector<1x1xf32> to vector<256x1xf32>
    %13 = arith.addf %10, %12 : vector<256x1xf32>
    %c0_10 = arith.constant 0 : index
    %c0_11 = arith.constant 0 : index
    %14 = vector.load %arg9[%c0_10, %c0_11] : memref<256x1xf32, #tpu.memory_space<vmem>>, vector<256x1xf32>
    tpu.vector_store %arg9[%c0_10, %c0_11], %13 {strides = array<i32>} : memref<256x1xf32, #tpu.memory_space<vmem>>, vector<256x1xf32>,
    return
  }
  func.func @transform_0(%arg0: i32) -> (i32, i32) {
    %c0_i32 = arith.constant 0 : i32
    %c0_i32_0 = arith.constant 0 : i32
    return %arg0, %c0_i32 : i32, i32
  }
  func.func @transform_1(%arg0: i32) -> (i32, i32) {
    %c0_i32 = arith.constant 0 : i32
    %c0_i32_0 = arith.constant 0 : i32
    %c0_i32_1 = arith.constant 0 : i32
    return %c0_i32, %c0_i32_0 : i32, i32
  }
  func.func @transform_2(%arg0: i32) -> (i32, i32, i32) {
    %c0_i32 = arith.constant 0 : i32
    %c0_i32_0 = arith.constant 0 : i32
    %c0_i32_1 = arith.constant 0 : i32
    %c0_i32_2 = arith.constant 0 : i32
    return %c0_i32, %c0_i32_0, %c0_i32_1 : i32, i32, i32
  }
  func.func @transform_3(%arg0: i32) -> (i32, i32, i32) {
    %c0_i32 = arith.constant 0 : i32
    %c0_i32_0 = arith.constant 0 : i32
    %c0_i32_1 = arith.constant 0 : i32
    %c0_i32_2 = arith.constant 0 : i32
    return %c0_i32, %c0_i32_0, %c0_i32_1 : i32, i32, i32
  }
  func.func @transform_4(%arg0: i32) -> (i32, i32, i32) {
    %c0_i32 = arith.constant 0 : i32
    %c0_i32_0 = arith.constant 0 : i32
    %c0_i32_1 = arith.constant 0 : i32
    %c0_i32_2 = arith.constant 0 : i32
    return %c0_i32, %c0_i32_0, %c0_i32_1 : i32, i32, i32
  }
  func.func @transform_5(%arg0: i32) -> (i32, i32, i32) {
    %c0_i32 = arith.constant 0 : i32
    %c0_i32_0 = arith.constant 0 : i32
    %c0_i32_1 = arith.constant 0 : i32
    %c0_i32_2 = arith.constant 0 : i32
    return %c0_i32, %c0_i32_0, %c0_i32_1 : i32, i32, i32
  }
  func.func @transform_6(%arg0: i32) -> (i32, i32) {
    %c0_i32 = arith.constant 0 : i32
    %c0_i32_0 = arith.constant 0 : i32
    %c0_i32_1 = arith.constant 0 : i32
    return %c0_i32, %c0_i32_0 : i32, i32
  }
  func.func @transform_7(%arg0: i32) -> (i32, i32) {
    %c0_i32 = arith.constant 0 : i32
    %c0_i32_0 = arith.constant 0 : i32
    %c0_i32_1 = arith.constant 0 : i32
    return %c0_i32, %c0_i32_0 : i32, i32
  }
  func.func @transform_8(%arg0: i32) -> (i32, i32) {
    %c0_i32 = arith.constant 0 : i32
    %c0_i32_0 = arith.constant 0 : i32
    return %arg0, %c0_i32 : i32, i32
  }
}

</mosaic_0001>

<llo_original>
// kernel: _decoder_forward.1
$region0: #{_decoder_forward.1}
  #allocation0 [shape = 'u32[]', space=smem, size = 0x4, offset = 0x4, fixed_abs, tag = 'smem constant byte address 0x4 - core index']
  #allocation1 [shape = 'u32[144,128]{1,0:T(1,128)}', space=vmem, size = 0x12000, scoped, tag = 'internal scratch']
  #allocation2 [shape = 'f32[1,1]{1,0:T(1,128)S(1)}', space=vmem, size = 0x200, scoped, tag = 'scoped memory for _decoder_forward.1']
  %s0 = inlined_call_operand.vmem [shape: f32[256,8], index: 0, kind: input, shape index: {}]
  %s1 = inlined_call_operand.vmem [shape: f32[8,128], index: 1, kind: input, shape index: {}]
  %s2 = inlined_call_operand.vmem [shape: bf16[5,128,128], index: 2, kind: input, shape index: {}]
  %s3 = inlined_call_operand.vmem [shape: f32[5,1,128], index: 3, kind: input, shape index: {}]
  %s4 = inlined_call_operand.hbm [shape: bf16[5,128,128], index: 4, kind: input, shape index: {}]
  %s5 = inlined_call_operand.vmem [shape: f32[5,1,128], index: 5, kind: input, shape index: {}]
  %s6 = inlined_call_operand.vmem [shape: bf16[128,128], index: 6, kind: input, shape index: {}]
  %s7 = inlined_call_operand.<no memory space> [shape: f32[1,1], index: 7, kind: input, shape index: {}]
  %s8 = inlined_call_operand.vmem [shape: f32[256,1], index: 8, kind: output, shape index: {}]
  %s9 = sld [smem:[#allocation0]]
  $region53: #{_decoder_forward.1} parent=0
    _
  %s11 = ssub.s32 1, %s9
  %s12 = scalar_select 0, %s11, %s9
  %v13 = vstv %s7
  %14 = vst [vmem:[#allocation2] sm:$0x1] %v13
  $region1: #{_decoder_forward.1} parent=0
    #allocation3 [shape = 'u8[163840]{0}', space=vmem, size = 0x28000, scoped, tag = 'input window, operand 4, single buffered']
    #allocation4 [shape = 's32[1]{0}', space=sflag, size = 0x4, scoped, tag = 'scoped memory for _decoder_forward.1']
    %15 = vsyncpa [#allocation4], 0
    // Predicated region
    $region2: #{_decoder_forward.1} parent=1 // pred_check
      _
    $region3: #{_decoder_forward.1} parent=1 // pred_check_branch
      %17 = sbr.rel (0) target = $region5
    $region4: #{_decoder_forward.1} parent=1 // pred_region
      _
    $region5: #{_decoder_forward.1} parent=1 // pred_fallthru
      _
    // Predicated region
    $region6: #{_decoder_forward.1} parent=1 // pred_check
      _
    $region7: #{_decoder_forward.1} parent=1 // pred_check_branch
      %19 = sbr.rel (0) target = $region9
    $region8: #{_decoder_forward.1} parent=1 // pred_region
      _
    $region9: #{_decoder_forward.1} parent=1 // pred_fallthru
      _
    // Predicated region
    $region10: #{_decoder_forward.1} parent=1 // pred_check
      _
    $region11: #{_decoder_forward.1} parent=1 // pred_check_branch
      %21 = sbr.rel (0) target = $region13
    $region12: #{_decoder_forward.1} parent=1 // pred_region
      _
    $region13: #{_decoder_forward.1} parent=1 // pred_fallthru
      _
    // Predicated region
    $region14: #{_decoder_forward.1} parent=1 // pred_check
      _
    $region15: #{_decoder_forward.1} parent=1 // pred_check_branch
      %23 = sbr.rel (0) target = $region17
    $region16: #{_decoder_forward.1} parent=1 // pred_region
      _
    $region17: #{_decoder_forward.1} parent=1 // pred_fallthru
      _
    // Predicated region
    $region18: #{_decoder_forward.1} parent=1 // pred_check
      _
    $region19: #{_decoder_forward.1} parent=1 // pred_check_branch
      %25 = sbr.rel (0) target = $region21
    $region20: #{_decoder_forward.1} parent=1 // pred_region
      %s27 = ssub.s32 5120, 5120
      %28 = vsyncadd [#allocation4], %s27
      %s29 = sshll.u32 [#allocation3], 4
      %s30 = int_to_ptr.vmem [resolvable:$true] %s29
      %35 = dma.hbm_to_vmem [thread:$0]  %s4, 5120, %s30, [#allocation4], 64, 64, 4
    $region21: #{_decoder_forward.1} parent=1 // pred_fallthru
      _
    // Predicated region
    $region22: #{_decoder_forward.1} parent=1 // pred_check
      _
    $region23: #{_decoder_forward.1} parent=1 // pred_check_branch
      %37 = sbr.rel (0) target = $region25
    $region24: #{_decoder_forward.1} parent=1 // pred_region
      _
    $region25: #{_decoder_forward.1} parent=1 // pred_fallthru
      _
    // Predicated region
    $region26: #{_decoder_forward.1} parent=1 // pred_check
      _
    $region27: #{_decoder_forward.1} parent=1 // pred_check_branch
      %39 = sbr.rel (0) target = $region29
    $region28: #{_decoder_forward.1} parent=1 // pred_region
      _
    $region29: #{_decoder_forward.1} parent=1 // pred_fallthru
      _
    // Predicated region
    $region30: #{_decoder_forward.1} parent=1 // pred_check
      _
    $region31: #{_decoder_forward.1} parent=1 // pred_check_branch
      %41 = sbr.rel (0) target = $region33
    $region32: #{_decoder_forward.1} parent=1 // pred_region
      _
    $region33: #{_decoder_forward.1} parent=1 // pred_fallthru
      _
    // Predicated region
    $region34: #{_decoder_forward.1} parent=1 // pred_check
      _
    $region35: #{_decoder_forward.1} parent=1 // pred_check_branch
      %43 = sbr.rel (0) target = $region37
    $region36: #{_decoder_forward.1} parent=1 // pred_region
      %44 = dma.done [#allocation4], 5120
    $region37: #{_decoder_forward.1} parent=1 // pred_fallthru
      _
    %v46 = vld [vmem:[%s0] sm:$0xff]
    %v47 = vld [vmem:[%s0 + $0x8] sm:$0xff]
    %v48 = vld [vmem:[%s0 + $0x10] sm:$0xff]
    %v49 = vld [vmem:[%s0 + $0x18] sm:$0xff]
    %v50 = vld [vmem:[%s0 + $0x20] sm:$0xff]
    %v51 = vld [vmem:[%s0 + $0x28] sm:$0xff]
    %v52 = vld [vmem:[%s0 + $0x30] sm:$0xff]
    %v53 = vld [vmem:[%s0 + $0x38] sm:$0xff]
    %v54 = vld [vmem:[%s0 + $0x40] sm:$0xff]
    %v55 = vld [vmem:[%s0 + $0x48] sm:$0xff]
    %v56 = vld [vmem:[%s0 + $0x50] sm:$0xff]
    %v57 = vld [vmem:[%s0 + $0x58] sm:$0xff]
    %v58 = vld [vmem:[%s0 + $0x60] sm:$0xff]
    %v59 = vld [vmem:[%s0 + $0x68] sm:$0xff]
    %v60 = vld [vmem:[%s0 + $0x70] sm:$0xff]
    %v61 = vld [vmem:[%s0 + $0x78] sm:$0xff]
    %v62 = vld [vmem:[%s0 + $0x80] sm:$0xff]
    %v63 = vld [vmem:[%s0 + $0x88] sm:$0xff]
    %v64 = vld [vmem:[%s0 + $0x90] sm:$0xff]
    %v65 = vld [vmem:[%s0 + $0x98] sm:$0xff]
    %v66 = vld [vmem:[%s0 + $0xa0] sm:$0xff]
    %v67 = vld [vmem:[%s0 + $0xa8] sm:$0xff]
    %v68 = vld [vmem:[%s0 + $0xb0] sm:$0xff]
    %v69 = vld [vmem:[%s0 + $0xb8] sm:$0xff]
    %v70 = vld [vmem:[%s0 + $0xc0] sm:$0xff]
    %v71 = vld [vmem:[%s0 + $0xc8] sm:$0xff]
    %v72 = vld [vmem:[%s0 + $0xd0] sm:$0xff]
    %v73 = vld [vmem:[%s0 + $0xd8] sm:$0xff]
    %v74 = vld [vmem:[%s0 + $0xe0] sm:$0xff]
    %v75 = vld [vmem:[%s0 + $0xe8] sm:$0xff]
    %v76 = vld [vmem:[%s0 + $0xf0] sm:$0xff]
    %v77 = vld [vmem:[%s0 + $0xf8] sm:$0xff]
    %v78 = vld [vmem:[%s1] sm:$0xff]
    %vm79 = vcmask 64512
    %v81 = vsel %vm79, %v46, 0
    %v84 = vsel %vm79, %v47, 0
    %v87 = vsel %vm79, %v48, 0
    %v90 = vsel %vm79, %v49, 0
    %v93 = vsel %vm79, %v50, 0
    %v96 = vsel %vm79, %v51, 0
    %v99 = vsel %vm79, %v52, 0
    %v102 = vsel %vm79, %v53, 0
    %v105 = vsel %vm79, %v54, 0
    %v108 = vsel %vm79, %v55, 0
    %v111 = vsel %vm79, %v56, 0
    %v114 = vsel %vm79, %v57, 0
    %v117 = vsel %vm79, %v58, 0
    %v120 = vsel %vm79, %v59, 0
    %v123 = vsel %vm79, %v60, 0
    %v126 = vsel %vm79, %v61, 0
    %v129 = vsel %vm79, %v62, 0
    %v132 = vsel %vm79, %v63, 0
    %v135 = vsel %vm79, %v64, 0
    %v138 = vsel %vm79, %v65, 0
    %v141 = vsel %vm79, %v66, 0
    %v144 = vsel %vm79, %v67, 0
    %v147 = vsel %vm79, %v68, 0
    %v150 = vsel %vm79, %v69, 0
    %v153 = vsel %vm79, %v70, 0
    %v156 = vsel %vm79, %v71, 0
    %v159 = vsel %vm79, %v72, 0
    %v162 = vsel %vm79, %v73, 0
    %v165 = vsel %vm79, %v74, 0
    %v168 = vsel %vm79, %v75, 0
    %v171 = vsel %vm79, %v76, 0
    %v174 = vsel %vm79, %v77, 0
    %176 = vmatprep.subr.mxu0 0.0
    %177 = vmatpush1.msra.mxu0 0.0
    %178 = vmatprep.subr.mxu0 0.0
    %179 = vmatpush1.msra.mxu0 0.0
    %180 = vmatprep.subr.mxu0 0.0
    %181 = vmatpush1.msra.mxu0 0.0
    %182 = vmatprep.subr.mxu0 0.0
    %183 = vmatpush1.msra.mxu0 0.0
    %184 = vmatprep.subr.mxu0 0.0
    %185 = vmatpush1.msra.mxu0 0.0
    %186 = vmatprep.subr.mxu0 0.0
    %187 = vmatpush1.msra.mxu0 0.0
    %188 = vmatprep.subr.mxu0 0.0
    %189 = vmatpush1.msra.mxu0 0.0
    %190 = vmatprep.subr.mxu0 0.0
    %191 = vmatpush1.msra.mxu0 0.0
    %192 = vmatprep.subr.mxu0 0.0
    %193 = vmatpush1.msra.mxu0 0.0
    %194 = vmatprep.subr.mxu0 0.0
    %195 = vmatpush1.msra.mxu0 0.0
    %196 = vmatprep.subr.mxu0 0.0
    %197 = vmatpush1.msra.mxu0 0.0
    %198 = vmatprep.subr.mxu0 0.0
    %199 = vmatpush1.msra.mxu0 0.0
    %200 = vmatprep.subr.mxu0 0.0
    %201 = vmatpush1.msra.mxu0 0.0
    %202 = vmatprep.subr.mxu0 0.0
    %203 = vmatpush1.msra.mxu0 0.0
    %204 = vmatprep.subr.mxu0 0.0
    %205 = vmatpush1.msra.mxu0 0.0
    %206 = vmatprep.subr.mxu0 0.0
    %207 = vmatpush1.msra.mxu0 %v78
    %208 = vmatprep.subr.mxu0 0.0
    %209 = vmatpush2.msra.mxu0 0.0
    %210 = vmatprep.subr.mxu0 0.0
    %211 = vmatpush2.msra.mxu0 0.0
    %212 = vmatprep.subr.mxu0 0.0
    %213 = vmatpush2.msra.mxu0 0.0
    %214 = vmatprep.subr.mxu0 0.0
    %215 = vmatpush2.msra.mxu0 0.0
    %216 = vmatprep.subr.mxu0 0.0
    %217 = vmatpush2.msra.mxu0 0.0
    %218 = vmatprep.subr.mxu0 0.0
    %219 = vmatpush2.msra.mxu0 0.0
    %220 = vmatprep.subr.mxu0 0.0
    %221 = vmatpush2.msra.mxu0 0.0
    %222 = vmatprep.subr.mxu0 0.0
    %223 = vmatpush2.msra.mxu0 0.0
    %224 = vmatprep.subr.mxu0 0.0
    %225 = vmatpush2.msra.mxu0 0.0
    %226 = vmatprep.subr.mxu0 0.0
    %227 = vmatpush2.msra.mxu0 0.0
    %228 = vmatprep.subr.mxu0 0.0
    %229 = vmatpush2.msra.mxu0 0.0
    %230 = vmatprep.subr.mxu0 0.0
    %231 = vmatpush2.msra.mxu0 0.0
    %232 = vmatprep.subr.mxu0 0.0
    %233 = vmatpush2.msra.mxu0 0.0
    %234 = vmatprep.subr.mxu0 0.0
    %235 = vmatpush2.msra.mxu0 0.0
    %236 = vmatprep.subr.mxu0 0.0
    %237 = vmatpush2.msra.mxu0 0.0
    %238 = vmatprep.subr.mxu0 0.0
    %239 = vmatpush2.msra.mxu0 0.0
    %240 = vmatprep.mubr.f32.mxu0 0.0
    %241 = vmatmul.mubr.f32.gmra.mxu0 %v81
    %v242 = vpop.f32.mrf.mxu0
    %v243 = vadd.f32 0.0, %v242
    %v244 = vpop.f32.mrf.mxu0
    %245 = vmatprep.mubr.f32.mxu0 0.0
    %246 = vmatmul.mubr.f32.gmra.mxu0 %v84
    %v247 = vpop.f32.mrf.mxu0
    %v248 = vadd.f32 0.0, %v247
    %v249 = vpop.f32.mrf.mxu0
    %250 = vmatprep.mubr.f32.mxu0 0.0
    %251 = vmatmul.mubr.f32.gmra.mxu0 %v87
    %v252 = vpop.f32.mrf.mxu0
    %v253 = vadd.f32 0.0, %v252
    %v254 = vpop.f32.mrf.mxu0
    %255 = vmatprep.mubr.f32.mxu0 0.0
    %256 = vmatmul.mubr.f32.gmra.mxu0 %v90
    %v257 = vpop.f32.mrf.mxu0
    %v258 = vadd.f32 0.0, %v257
    %v259 = vpop.f32.mrf.mxu0
    %260 = vmatprep.mubr.f32.mxu0 0.0
    %261 = vmatmul.mubr.f32.gmra.mxu0 %v93
    %v262 = vpop.f32.mrf.mxu0
    %v263 = vadd.f32 0.0, %v262
    %v264 = vpop.f32.mrf.mxu0
    %265 = vmatprep.mubr.f32.mxu0 0.0
    %266 = vmatmul.mubr.f32.gmra.mxu0 %v96
    %v267 = vpop.f32.mrf.mxu0
    %v268 = vadd.f32 0.0, %v267
    %v269 = vpop.f32.mrf.mxu0
    %270 = vmatprep.mubr.f32.mxu0 0.0
    %271 = vmatmul.mubr.f32.gmra.mxu0 %v99
    %v272 = vpop.f32.mrf.mxu0
    %v273 = vadd.f32 0.0, %v272
    %v274 = vpop.f32.mrf.mxu0
    %275 = vmatprep.mubr.f32.mxu0 0.0
    %276 = vmatmul.mubr.f32.gmra.mxu0 %v102
    %v277 = vpop.f32.mrf.mxu0
    %v278 = vadd.f32 0.0, %v277
    %v279 = vpop.f32.mrf.mxu0
    %280 = vmatprep.mubr.f32.mxu0 0.0
    %281 = vmatmul.mubr.f32.gmra.mxu0 %v105
    %v282 = vpop.f32.mrf.mxu0
    %v283 = vadd.f32 0.0, %v282
    %v284 = vpop.f32.mrf.mxu0
    %285 = vmatprep.mubr.f32.mxu0 0.0
    %286 = vmatmul.mubr.f32.gmra.mxu0 %v108
    %v287 = vpop.f32.mrf.mxu0
    %v288 = vadd.f32 0.0, %v287
    %v289 = vpop.f32.mrf.mxu0
    %290 = vmatprep.mubr.f32.mxu0 0.0
    %291 = vmatmul.mubr.f32.gmra.mxu0 %v111
    %v292 = vpop.f32.mrf.mxu0
    %v293 = vadd.f32 0.0, %v292
    %v294 = vpop.f32.mrf.mxu0
    %295 = vmatprep.mubr.f32.mxu0 0.0
    %296 = vmatmul.mubr.f32.gmra.mxu0 %v114
    %v297 = vpop.f32.mrf.mxu0
    %v298 = vadd.f32 0.0, %v297
    %v299 = vpop.f32.mrf.mxu0
    %300 = vmatprep.mubr.f32.mxu0 0.0
    %301 = vmatmul.mubr.f32.gmra.mxu0 %v117
    %v302 = vpop.f32.mrf.mxu0
    %v303 = vadd.f32 0.0, %v302
    %v304 = vpop.f32.mrf.mxu0
    %305 = vmatprep.mubr.f32.mxu0 0.0
    %306 = vmatmul.mubr.f32.gmra.mxu0 %v120
    %v307 = vpop.f32.mrf.mxu0
    %v308 = vadd.f32 0.0, %v307
    %v309 = vpop.f32.mrf.mxu0
    %310 = vmatprep.mubr.f32.mxu0 0.0
    %311 = vmatmul.mubr.f32.gmra.mxu0 %v123
    %v312 = vpop.f32.mrf.mxu0
    %v313 = vadd.f32 0.0, %v312
    %v314 = vpop.f32.mrf.mxu0
    %315 = vmatprep.mubr.f32.mxu0 0.0
    %316 = vmatmul.mubr.f32.gmra.mxu0 %v126
    %v317 = vpop.f32.mrf.mxu0
    %v318 = vadd.f32 0.0, %v317
    %v319 = vpop.f32.mrf.mxu0
    %320 = vmatprep.mubr.f32.mxu0 0.0
    %321 = vmatmul.mubr.f32.gmra.mxu0 %v129
    %v322 = vpop.f32.mrf.mxu0
    %v323 = vadd.f32 0.0, %v322
    %v324 = vpop.f32.mrf.mxu0
    %325 = vmatprep.mubr.f32.mxu0 0.0
    %326 = vmatmul.mubr.f32.gmra.mxu0 %v132
    %v327 = vpop.f32.mrf.mxu0
    %v328 = vadd.f32 0.0, %v327
    %v329 = vpop.f32.mrf.mxu0
    %330 = vmatprep.mubr.f32.mxu0 0.0
    %331 = vmatmul.mubr.f32.gmra.mxu0 %v135
    %v332 = vpop.f32.mrf.mxu0
    %v333 = vadd.f32 0.0, %v332
    %v334 = vpop.f32.mrf.mxu0
    %335 = vmatprep.mubr.f32.mxu0 0.0
    %336 = vmatmul.mubr.f32.gmra.mxu0 %v138
    %v337 = vpop.f32.mrf.mxu0
    %v338 = vadd.f32 0.0, %v337
    %v339 = vpop.f32.mrf.mxu0
    %340 = vmatprep.mubr.f32.mxu0 0.0
    %341 = vmatmul.mubr.f32.gmra.mxu0 %v141
    %v342 = vpop.f32.mrf.mxu0
    %v343 = vadd.f32 0.0, %v342
    %v344 = vpop.f32.mrf.mxu0
    %345 = vmatprep.mubr.f32.mxu0 0.0
    %346 = vmatmul.mubr.f32.gmra.mxu0 %v144
    %v347 = vpop.f32.mrf.mxu0
    %v348 = vadd.f32 0.0, %v347
    %v349 = vpop.f32.mrf.mxu0
    %350 = vmatprep.mubr.f32.mxu0 0.0
    %351 = vmatmul.mubr.f32.gmra.mxu0 %v147
    %v352 = vpop.f32.mrf.mxu0
    %v353 = vadd.f32 0.0, %v352
    %v354 = vpop.f32.mrf.mxu0
    %355 = vmatprep.mubr.f32.mxu0 0.0
    %356 = vmatmul.mubr.f32.gmra.mxu0 %v150
    %v357 = vpop.f32.mrf.mxu0
    %v358 = vadd.f32 0.0, %v357
    %v359 = vpop.f32.mrf.mxu0
    %360 = vmatprep.mubr.f32.mxu0 0.0
    %361 = vmatmul.mubr.f32.gmra.mxu0 %v153
    %v362 = vpop.f32.mrf.mxu0
    %v363 = vadd.f32 0.0, %v362
    %v364 = vpop.f32.mrf.mxu0
    %365 = vmatprep.mubr.f32.mxu0 0.0
    %366 = vmatmul.mubr.f32.gmra.mxu0 %v156
    %v367 = vpop.f32.mrf.mxu0
    %v368 = vadd.f32 0.0, %v367
    %v369 = vpop.f32.mrf.mxu0
    %370 = vmatprep.mubr.f32.mxu0 0.0
    %371 = vmatmul.mubr.f32.gmra.mxu0 %v159
    %v372 = vpop.f32.mrf.mxu0
    %v373 = vadd.f32 0.0, %v372
    %v374 = vpop.f32.mrf.mxu0
    %375 = vmatprep.mubr.f32.mxu0 0.0
    %376 = vmatmul.mubr.f32.gmra.mxu0 %v162
    %v377 = vpop.f32.mrf.mxu0
    %v378 = vadd.f32 0.0, %v377
    %v379 = vpop.f32.mrf.mxu0
    %380 = vmatprep.mubr.f32.mxu0 0.0
    %381 = vmatmul.mubr.f32.gmra.mxu0 %v165
    %v382 = vpop.f32.mrf.mxu0
    %v383 = vadd.f32 0.0, %v382
    %v384 = vpop.f32.mrf.mxu0
    %385 = vmatprep.mubr.f32.mxu0 0.0
    %386 = vmatmul.mubr.f32.gmra.mxu0 %v168
    %v387 = vpop.f32.mrf.mxu0
    %v388 = vadd.f32 0.0, %v387
    %v389 = vpop.f32.mrf.mxu0
    %390 = vmatprep.mubr.f32.mxu0 0.0
    %391 = vmatmul.mubr.f32.gmra.mxu0 %v171
    %v392 = vpop.f32.mrf.mxu0
    %v393 = vadd.f32 0.0, %v392
    %v394 = vpop.f32.mrf.mxu0
    %395 = vmatprep.mubr.f32.mxu0 0.0
    %396 = vmatmul.mubr.f32.gmra.mxu0 %v174
    %v397 = vpop.f32.mrf.mxu0
    %v398 = vadd.f32 0.0, %v397
    %v399 = vpop.f32.mrf.mxu0
    %400 = vdwg.mxu0
    loop: start=0, step=1, limit=5
    $region38: #{_decoder_forward.1} parent=1 // loop_pre_header
      _
    $region39: #{_decoder_forward.1} parent=1 // loop_header
      %s402 = sphi 0, %s406
      %p403 = scmp.ge.s32.totalorder %s402, 5
      %v407 = vphi %v243, %v990
      %v408 = vphi %v248, %v991
      %v409 = vphi %v253, %v992
      %v410 = vphi %v258, %v993
      %v411 = vphi %v263, %v994
      %v412 = vphi %v268, %v995
      %v413 = vphi %v273, %v996
      %v414 = vphi %v278, %v997
      %v415 = vphi %v283, %v998
      %v416 = vphi %v288, %v999
      %v417 = vphi %v293, %v1000
      %v418 = vphi %v298, %v1001
      %v419 = vphi %v303, %v1002
      %v420 = vphi %v308, %v1003
      %v421 = vphi %v313, %v1004
      %v422 = vphi %v318, %v1005
      %v423 = vphi %v323, %v1006
      %v424 = vphi %v328, %v1007
      %v425 = vphi %v333, %v1008
      %v426 = vphi %v338, %v1009
      %v427 = vphi %v343, %v1010
      %v428 = vphi %v348, %v1011
      %v429 = vphi %v353, %v1012
      %v430 = vphi %v358, %v1013
      %v431 = vphi %v363, %v1014
      %v432 = vphi %v368, %v1015
      %v433 = vphi %v373, %v1016
      %v434 = vphi %v378, %v1017
      %v435 = vphi %v383, %v1018
      %v436 = vphi %v388, %v1019
      %v437 = vphi %v393, %v1020
      %v438 = vphi %v398, %v1021
    $region40: #{_decoder_forward.1} parent=1 // loop_header_branch
      %405 = sbr.rel (%p403) target = $region44
    $region41: #{_decoder_forward.1} parent=1 // loop_body
      %v439 = vmax.f32 %v407, 0.0
      %v440 = vmax.f32 %v408, 0.0
      %v441 = vmax.f32 %v409, 0.0
      %v442 = vmax.f32 %v410, 0.0
      %v443 = vmax.f32 %v411, 0.0
      %v444 = vmax.f32 %v412, 0.0
      %v445 = vmax.f32 %v413, 0.0
      %v446 = vmax.f32 %v414, 0.0
      %v447 = vmax.f32 %v415, 0.0
      %v448 = vmax.f32 %v416, 0.0
      %v449 = vmax.f32 %v417, 0.0
      %v450 = vmax.f32 %v418, 0.0
      %v451 = vmax.f32 %v419, 0.0
      %v452 = vmax.f32 %v420, 0.0
      %v453 = vmax.f32 %v421, 0.0
      %v454 = vmax.f32 %v422, 0.0
      %v455 = vmax.f32 %v423, 0.0
      %v456 = vmax.f32 %v424, 0.0
      %v457 = vmax.f32 %v425, 0.0
      %v458 = vmax.f32 %v426, 0.0
      %v459 = vmax.f32 %v427, 0.0
      %v460 = vmax.f32 %v428, 0.0
      %v461 = vmax.f32 %v429, 0.0
      %v462 = vmax.f32 %v430, 0.0
      %v463 = vmax.f32 %v431, 0.0
      %v464 = vmax.f32 %v432, 0.0
      %v465 = vmax.f32 %v433, 0.0
      %v466 = vmax.f32 %v434, 0.0
      %v467 = vmax.f32 %v435, 0.0
      %v468 = vmax.f32 %v436, 0.0
      %v469 = vmax.f32 %v437, 0.0
      %v470 = vmax.f32 %v438, 0.0
      %v471 = vpack.c.bf16 %v440, %v439
      %v472 = vpack.c.bf16 %v442, %v441
      %v473 = vpack.c.bf16 %v444, %v443
      %v474 = vpack.c.bf16 %v446, %v445
      %v475 = vpack.c.bf16 %v448, %v447
      %v476 = vpack.c.bf16 %v450, %v449
      %v477 = vpack.c.bf16 %v452, %v451
      %v478 = vpack.c.bf16 %v454, %v453
      %v479 = vpack.c.bf16 %v456, %v455
      %v480 = vpack.c.bf16 %v458, %v457
      %v481 = vpack.c.bf16 %v460, %v459
      %v482 = vpack.c.bf16 %v462, %v461
      %v483 = vpack.c.bf16 %v464, %v463
      %v484 = vpack.c.bf16 %v466, %v465
      %v485 = vpack.c.bf16 %v468, %v467
      %v486 = vpack.c.bf16 %v470, %v469
      %s487 = smul.u32 %s402, 16
      %s488 = smul.addr %s487, 4
      %s489 = scalar_lea.vmem %s2, %s488
      %v490 = vld [vmem:[%s489] sm:$0xf]
      %v491 = vld [vmem:[%s489 + $0x4] sm:$0xf]
      %v492 = vld [vmem:[%s489 + $0x8] sm:$0xf]
      %v493 = vld [vmem:[%s489 + $0xc] sm:$0xf]
      %v494 = vld [vmem:[%s489 + $0x10] sm:$0xf]
      %v495 = vld [vmem:[%s489 + $0x14] sm:$0xf]
      %v496 = vld [vmem:[%s489 + $0x18] sm:$0xf]
      %v497 = vld [vmem:[%s489 + $0x1c] sm:$0xf]
      %v498 = vld [vmem:[%s489 + $0x20] sm:$0xf]
      %v499 = vld [vmem:[%s489 + $0x24] sm:$0xf]
      %v500 = vld [vmem:[%s489 + $0x28] sm:$0xf]
      %v501 = vld [vmem:[%s489 + $0x2c] sm:$0xf]
      %v502 = vld [vmem:[%s489 + $0x30] sm:$0xf]
      %v503 = vld [vmem:[%s489 + $0x34] sm:$0xf]
      %v504 = vld [vmem:[%s489 + $0x38] sm:$0xf]
      %v505 = vld [vmem:[%s489 + $0x3c] sm:$0xf]
      %s506 = scalar_lea.vmem %s3, %s402
      %v507 = vld [vmem:[%s506] sm:$0x1]
      %v509 = vlaneseq
      %v510 = vshrl.u32 %v509, 7
      %v511 = vsub.s32 0, %v510
      %v512 = vrot.slane %v507, %v511
      %v530 = vunpack.c.l.b16 %v490
      %v531 = vunpack.c.l.b16 %v491
      %v532 = vunpack.c.l.b16 %v492
      %v533 = vunpack.c.l.b16 %v493
      %v534 = vunpack.c.l.b16 %v494
      %v535 = vunpack.c.l.b16 %v495
      %v536 = vunpack.c.l.b16 %v496
      %v537 = vunpack.c.l.b16 %v497
      %v538 = vunpack.c.l.b16 %v498
      %v539 = vunpack.c.l.b16 %v499
      %v540 = vunpack.c.l.b16 %v500
      %v541 = vunpack.c.l.b16 %v501
      %v542 = vunpack.c.l.b16 %v502
      %v543 = vunpack.c.l.b16 %v503
      %v544 = vunpack.c.l.b16 %v504
      %v545 = vunpack.c.l.b16 %v505
      %v546 = vpack.c.b16 %v531, %v530
      %v547 = vpack.c.b16 %v533, %v532
      %v548 = vpack.c.b16 %v535, %v534
      %v549 = vpack.c.b16 %v537, %v536
      %v550 = vpack.c.b16 %v539, %v538
      %v551 = vpack.c.b16 %v541, %v540
      %v552 = vpack.c.b16 %v543, %v542
      %v553 = vpack.c.b16 %v545, %v544
      %562 = vmatprep.subr.bf16.mxu0 0
      %563 = vmatpush1.bf16.msra.mxu0 %v553
      %564 = vmatprep.subr.bf16.mxu0 0
      %565 = vmatpush1.bf16.msra.mxu0 %v552
      %566 = vmatprep.subr.bf16.mxu0 0
      %567 = vmatpush1.bf16.msra.mxu0 %v551
      %568 = vmatprep.subr.bf16.mxu0 0
      %569 = vmatpush1.bf16.msra.mxu0 %v550
      %570 = vmatprep.subr.bf16.mxu0 0
      %571 = vmatpush1.bf16.msra.mxu0 %v549
      %572 = vmatprep.subr.bf16.mxu0 0
      %573 = vmatpush1.bf16.msra.mxu0 %v548
      %574 = vmatprep.subr.bf16.mxu0 0
      %575 = vmatpush1.bf16.msra.mxu0 %v547
      %576 = vmatprep.subr.bf16.mxu0 0
      %577 = vmatpush1.bf16.msra.mxu0 %v546
      %578 = vmatprep.subr.bf16.mxu0 0
      %579 = vmatpush2.bf16.msra.mxu0 0
      %580 = vmatprep.subr.bf16.mxu0 0
      %581 = vmatpush2.bf16.msra.mxu0 0
      %582 = vmatprep.subr.bf16.mxu0 0
      %583 = vmatpush2.bf16.msra.mxu0 0
      %584 = vmatprep.subr.bf16.mxu0 0
      %585 = vmatpush2.bf16.msra.mxu0 0
      %586 = vmatprep.subr.bf16.mxu0 0
      %587 = vmatpush2.bf16.msra.mxu0 0
      %588 = vmatprep.subr.bf16.mxu0 0
      %589 = vmatpush2.bf16.msra.mxu0 0
      %590 = vmatprep.subr.bf16.mxu0 0
      %591 = vmatpush2.bf16.msra.mxu0 0
      %592 = vmatprep.subr.bf16.mxu0 0
      %593 = vmatpush2.bf16.msra.mxu0 0
      %594 = vmatprep.mubr.bf16.mxu0 0
      %595 = vmatmul.mubr.bf16.gmra.mxu0 %v471
      %v596 = vpop.f32.mrf.mxu0
      %v597 = vadd.f32 %v512, %v596
      %v598 = vpop.f32.mrf.mxu0
      %v599 = vpop.f32.mrf.mxu0
      %v600 = vadd.f32 %v512, %v599
      %v601 = vpop.f32.mrf.mxu0
      %602 = vmatprep.mubr.bf16.mxu0 0
      %603 = vmatmul.mubr.bf16.gmra.mxu0 %v472
      %v604 = vpop.f32.mrf.mxu0
      %v605 = vadd.f32 %v512, %v604
      %v606 = vpop.f32.mrf.mxu0
      %v607 = vpop.f32.mrf.mxu0
      %v608 = vadd.f32 %v512, %v607
      %v609 = vpop.f32.mrf.mxu0
      %610 = vmatprep.mubr.bf16.mxu0 0
      %611 = vmatmul.mubr.bf16.gmra.mxu0 %v473
      %v612 = vpop.f32.mrf.mxu0
      %v613 = vadd.f32 %v512, %v612
      %v614 = vpop.f32.mrf.mxu0
      %v615 = vpop.f32.mrf.mxu0
      %v616 = vadd.f32 %v512, %v615
      %v617 = vpop.f32.mrf.mxu0
      %618 = vmatprep.mubr.bf16.mxu0 0
      %619 = vmatmul.mubr.bf16.gmra.mxu0 %v474
      %v620 = vpop.f32.mrf.mxu0
      %v621 = vadd.f32 %v512, %v620
      %v622 = vpop.f32.mrf.mxu0
      %v623 = vpop.f32.mrf.mxu0
      %v624 = vadd.f32 %v512, %v623
      %v625 = vpop.f32.mrf.mxu0
      %626 = vmatprep.mubr.bf16.mxu0 0
      %627 = vmatmul.mubr.bf16.gmra.mxu0 %v475
      %v628 = vpop.f32.mrf.mxu0
      %v629 = vadd.f32 %v512, %v628
      %v630 = vpop.f32.mrf.mxu0
      %v631 = vpop.f32.mrf.mxu0
      %v632 = vadd.f32 %v512, %v631
      %v633 = vpop.f32.mrf.mxu0
      %634 = vmatprep.mubr.bf16.mxu0 0
      %635 = vmatmul.mubr.bf16.gmra.mxu0 %v476
      %v636 = vpop.f32.mrf.mxu0
      %v637 = vadd.f32 %v512, %v636
      %v638 = vpop.f32.mrf.mxu0
      %v639 = vpop.f32.mrf.mxu0
      %v640 = vadd.f32 %v512, %v639
      %v641 = vpop.f32.mrf.mxu0
      %642 = vmatprep.mubr.bf16.mxu0 0
      %643 = vmatmul.mubr.bf16.gmra.mxu0 %v477
      %v644 = vpop.f32.mrf.mxu0
      %v645 = vadd.f32 %v512, %v644
      %v646 = vpop.f32.mrf.mxu0
      %v647 = vpop.f32.mrf.mxu0
      %v648 = vadd.f32 %v512, %v647
      %v649 = vpop.f32.mrf.mxu0
      %650 = vmatprep.mubr.bf16.mxu0 0
      %651 = vmatmul.mubr.bf16.gmra.mxu0 %v478
      %v652 = vpop.f32.mrf.mxu0
      %v653 = vadd.f32 %v512, %v652
      %v654 = vpop.f32.mrf.mxu0
      %v655 = vpop.f32.mrf.mxu0
      %v656 = vadd.f32 %v512, %v655
      %v657 = vpop.f32.mrf.mxu0
      %658 = vmatprep.mubr.bf16.mxu0 0
      %659 = vmatmul.mubr.bf16.gmra.mxu0 %v479
      %v660 = vpop.f32.mrf.mxu0
      %v661 = vadd.f32 %v512, %v660
      %v662 = vpop.f32.mrf.mxu0
      %v663 = vpop.f32.mrf.mxu0
      %v664 = vadd.f32 %v512, %v663
      %v665 = vpop.f32.mrf.mxu0
      %666 = vmatprep.mubr.bf16.mxu0 0
      %667 = vmatmul.mubr.bf16.gmra.mxu0 %v480
      %v668 = vpop.f32.mrf.mxu0
      %v669 = vadd.f32 %v512, %v668
      %v670 = vpop.f32.mrf.mxu0
      %v671 = vpop.f32.mrf.mxu0
      %v672 = vadd.f32 %v512, %v671
      %v673 = vpop.f32.mrf.mxu0
      %674 = vmatprep.mubr.bf16.mxu0 0
      %675 = vmatmul.mubr.bf16.gmra.mxu0 %v481
      %v676 = vpop.f32.mrf.mxu0
      %v677 = vadd.f32 %v512, %v676
      %v678 = vpop.f32.mrf.mxu0
      %v679 = vpop.f32.mrf.mxu0
      %v680 = vadd.f32 %v512, %v679
      %v681 = vpop.f32.mrf.mxu0
      %682 = vmatprep.mubr.bf16.mxu0 0
      %683 = vmatmul.mubr.bf16.gmra.mxu0 %v482
      %v684 = vpop.f32.mrf.mxu0
      %v685 = vadd.f32 %v512, %v684
      %v686 = vpop.f32.mrf.mxu0
      %v687 = vpop.f32.mrf.mxu0
      %v688 = vadd.f32 %v512, %v687
      %v689 = vpop.f32.mrf.mxu0
      %690 = vmatprep.mubr.bf16.mxu0 0
      %691 = vmatmul.mubr.bf16.gmra.mxu0 %v483
      %v692 = vpop.f32.mrf.mxu0
      %v693 = vadd.f32 %v512, %v692
      %v694 = vpop.f32.mrf.mxu0
      %v695 = vpop.f32.mrf.mxu0
      %v696 = vadd.f32 %v512, %v695
      %v697 = vpop.f32.mrf.mxu0
      %698 = vmatprep.mubr.bf16.mxu0 0
      %699 = vmatmul.mubr.bf16.gmra.mxu0 %v484
      %v700 = vpop.f32.mrf.mxu0
      %v701 = vadd.f32 %v512, %v700
      %v702 = vpop.f32.mrf.mxu0
      %v703 = vpop.f32.mrf.mxu0
      %v704 = vadd.f32 %v512, %v703
      %v705 = vpop.f32.mrf.mxu0
      %706 = vmatprep.mubr.bf16.mxu0 0
      %707 = vmatmul.mubr.bf16.gmra.mxu0 %v485
      %v708 = vpop.f32.mrf.mxu0
      %v709 = vadd.f32 %v512, %v708
      %v710 = vpop.f32.mrf.mxu0
      %v711 = vpop.f32.mrf.mxu0
      %v712 = vadd.f32 %v512, %v711
      %v713 = vpop.f32.mrf.mxu0
      %714 = vmatprep.mubr.bf16.mxu0 0
      %715 = vmatmul.mubr.bf16.gmra.mxu0 %v486
      %v716 = vpop.f32.mrf.mxu0
      %v717 = vadd.f32 %v512, %v716
      %v718 = vpop.f32.mrf.mxu0
      %v719 = vpop.f32.mrf.mxu0
      %v720 = vadd.f32 %v512, %v719
      %v721 = vpop.f32.mrf.mxu0
      %722 = vdwg.mxu0
      %v723 = vpack.c.bf16 %v600, %v597
      %v724 = vpack.c.bf16 %v608, %v605
      %v725 = vpack.c.bf16 %v616, %v613
      %v726 = vpack.c.bf16 %v624, %v621
      %v727 = vpack.c.bf16 %v632, %v629
      %v728 = vpack.c.bf16 %v640, %v637
      %v729 = vpack.c.bf16 %v648, %v645
      %v730 = vpack.c.bf16 %v656, %v653
      %v731 = vpack.c.bf16 %v664, %v661
      %v732 = vpack.c.bf16 %v672, %v669
      %v733 = vpack.c.bf16 %v680, %v677
      %v734 = vpack.c.bf16 %v688, %v685
      %v735 = vpack.c.bf16 %v696, %v693
      %v736 = vpack.c.bf16 %v704, %v701
      %v737 = vpack.c.bf16 %v712, %v709
      %v738 = vpack.c.bf16 %v720, %v717
      %v739 = vmax.bf16 %v723, 0
      %v740 = vmax.bf16 %v724, 0
      %v741 = vmax.bf16 %v725, 0
      %v742 = vmax.bf16 %v726, 0
      %v743 = vmax.bf16 %v727, 0
      %v744 = vmax.bf16 %v728, 0
      %v745 = vmax.bf16 %v729, 0
      %v746 = vmax.bf16 %v730, 0
      %v747 = vmax.bf16 %v731, 0
      %v748 = vmax.bf16 %v732, 0
      %v749 = vmax.bf16 %v733, 0
      %v750 = vmax.bf16 %v734, 0
      %v751 = vmax.bf16 %v735, 0
      %v752 = vmax.bf16 %v736, 0
      %v753 = vmax.bf16 %v737, 0
      %v754 = vmax.bf16 %v738, 0
      %s755 = smul.addr %s487, 4
      %s756 = scalar_lea.vmem [#allocation3], %s755
      %v757 = vld [vmem:[%s756] sm:$0xf]
      %v758 = vld [vmem:[%s756 + $0x4] sm:$0xf]
      %v759 = vld [vmem:[%s756 + $0x8] sm:$0xf]
      %v760 = vld [vmem:[%s756 + $0xc] sm:$0xf]
      %v761 = vld [vmem:[%s756 + $0x10] sm:$0xf]
      %v762 = vld [vmem:[%s756 + $0x14] sm:$0xf]
      %v763 = vld [vmem:[%s756 + $0x18] sm:$0xf]
      %v764 = vld [vmem:[%s756 + $0x1c] sm:$0xf]
      %v765 = vld [vmem:[%s756 + $0x20] sm:$0xf]
      %v766 = vld [vmem:[%s756 + $0x24] sm:$0xf]
      %v767 = vld [vmem:[%s756 + $0x28] sm:$0xf]
      %v768 = vld [vmem:[%s756 + $0x2c] sm:$0xf]
      %v769 = vld [vmem:[%s756 + $0x30] sm:$0xf]
      %v770 = vld [vmem:[%s756 + $0x34] sm:$0xf]
      %v771 = vld [vmem:[%s756 + $0x38] sm:$0xf]
      %v772 = vld [vmem:[%s756 + $0x3c] sm:$0xf]
      %s773 = scalar_lea.vmem %s5, %s402
      %v774 = vld [vmem:[%s773] sm:$0x1]
      %v776 = vlaneseq
      %v777 = vshrl.u32 %v776, 7
      %v778 = vsub.s32 0, %v777
      %v779 = vrot.slane %v774, %v778
      %v797 = vunpack.c.l.b16 %v757
      %v798 = vunpack.c.l.b16 %v758
      %v799 = vunpack.c.l.b16 %v759
      %v800 = vunpack.c.l.b16 %v760
      %v801 = vunpack.c.l.b16 %v761
      %v802 = vunpack.c.l.b16 %v762
      %v803 = vunpack.c.l.b16 %v763
      %v804 = vunpack.c.l.b16 %v764
      %v805 = vunpack.c.l.b16 %v765
      %v806 = vunpack.c.l.b16 %v766
      %v807 = vunpack.c.l.b16 %v767
      %v808 = vunpack.c.l.b16 %v768
      %v809 = vunpack.c.l.b16 %v769
      %v810 = vunpack.c.l.b16 %v770
      %v811 = vunpack.c.l.b16 %v771
      %v812 = vunpack.c.l.b16 %v772
      %v813 = vpack.c.b16 %v798, %v797
      %v814 = vpack.c.b16 %v800, %v799
      %v815 = vpack.c.b16 %v802, %v801
      %v816 = vpack.c.b16 %v804, %v803
      %v817 = vpack.c.b16 %v806, %v805
      %v818 = vpack.c.b16 %v808, %v807
      %v819 = vpack.c.b16 %v810, %v809
      %v820 = vpack.c.b16 %v812, %v811
      %829 = vmatprep.subr.bf16.mxu0 0
      %830 = vmatpush1.bf16.msra.mxu0 %v820
      %831 = vmatprep.subr.bf16.mxu0 0
      %832 = vmatpush1.bf16.msra.mxu0 %v819
      %833 = vmatprep.subr.bf16.mxu0 0
      %834 = vmatpush1.bf16.msra.mxu0 %v818
      %835 = vmatprep.subr.bf16.mxu0 0
      %836 = vmatpush1.bf16.msra.mxu0 %v817
      %837 = vmatprep.subr.bf16.mxu0 0
      %838 = vmatpush1.bf16.msra.mxu0 %v816
      %839 = vmatprep.subr.bf16.mxu0 0
      %840 = vmatpush1.bf16.msra.mxu0 %v815
      %841 = vmatprep.subr.bf16.mxu0 0
      %842 = vmatpush1.bf16.msra.mxu0 %v814
      %843 = vmatprep.subr.bf16.mxu0 0
      %844 = vmatpush1.bf16.msra.mxu0 %v813
      %845 = vmatprep.subr.bf16.mxu0 0
      %846 = vmatpush2.bf16.msra.mxu0 0
      %847 = vmatprep.subr.bf16.mxu0 0
      %848 = vmatpush2.bf16.msra.mxu0 0
      %849 = vmatprep.subr.bf16.mxu0 0
      %850 = vmatpush2.bf16.msra.mxu0 0
      %851 = vmatprep.subr.bf16.mxu0 0
      %852 = vmatpush2.bf16.msra.mxu0 0
      %853 = vmatprep.subr.bf16.mxu0 0
      %854 = vmatpush2.bf16.msra.mxu0 0
      %855 = vmatprep.subr.bf16.mxu0 0
      %856 = vmatpush2.bf16.msra.mxu0 0
      %857 = vmatprep.subr.bf16.mxu0 0
      %858 = vmatpush2.bf16.msra.mxu0 0
      %859 = vmatprep.subr.bf16.mxu0 0
      %860 = vmatpush2.bf16.msra.mxu0 0
      %861 = vmatprep.mubr.bf16.mxu0 0
      %862 = vmatmul.mubr.bf16.gmra.mxu0 %v739
      %v863 = vpop.f32.mrf.mxu0
      %v864 = vadd.f32 %v779, %v863
      %v865 = vpop.f32.mrf.mxu0
      %v866 = vpop.f32.mrf.mxu0
      %v867 = vadd.f32 %v779, %v866
      %v868 = vpop.f32.mrf.mxu0
      %869 = vmatprep.mubr.bf16.mxu0 0
      %870 = vmatmul.mubr.bf16.gmra.mxu0 %v740
      %v871 = vpop.f32.mrf.mxu0
      %v872 = vadd.f32 %v779, %v871
      %v873 = vpop.f32.mrf.mxu0
      %v874 = vpop.f32.mrf.mxu0
      %v875 = vadd.f32 %v779, %v874
      %v876 = vpop.f32.mrf.mxu0
      %877 = vmatprep.mubr.bf16.mxu0 0
      %878 = vmatmul.mubr.bf16.gmra.mxu0 %v741
      %v879 = vpop.f32.mrf.mxu0
      %v880 = vadd.f32 %v779, %v879
      %v881 = vpop.f32.mrf.mxu0
      %v882 = vpop.f32.mrf.mxu0
      %v883 = vadd.f32 %v779, %v882
      %v884 = vpop.f32.mrf.mxu0
      %885 = vmatprep.mubr.bf16.mxu0 0
      %886 = vmatmul.mubr.bf16.gmra.mxu0 %v742
      %v887 = vpop.f32.mrf.mxu0
      %v888 = vadd.f32 %v779, %v887
      %v889 = vpop.f32.mrf.mxu0
      %v890 = vpop.f32.mrf.mxu0
      %v891 = vadd.f32 %v779, %v890
      %v892 = vpop.f32.mrf.mxu0
      %893 = vmatprep.mubr.bf16.mxu0 0
      %894 = vmatmul.mubr.bf16.gmra.mxu0 %v743
      %v895 = vpop.f32.mrf.mxu0
      %v896 = vadd.f32 %v779, %v895
      %v897 = vpop.f32.mrf.mxu0
      %v898 = vpop.f32.mrf.mxu0
      %v899 = vadd.f32 %v779, %v898
      %v900 = vpop.f32.mrf.mxu0
      %901 = vmatprep.mubr.bf16.mxu0 0
      %902 = vmatmul.mubr.bf16.gmra.mxu0 %v744
      %v903 = vpop.f32.mrf.mxu0
      %v904 = vadd.f32 %v779, %v903
      %v905 = vpop.f32.mrf.mxu0
      %v906 = vpop.f32.mrf.mxu0
      %v907 = vadd.f32 %v779, %v906
      %v908 = vpop.f32.mrf.mxu0
      %909 = vmatprep.mubr.bf16.mxu0 0
      %910 = vmatmul.mubr.bf16.gmra.mxu0 %v745
      %v911 = vpop.f32.mrf.mxu0
      %v912 = vadd.f32 %v779, %v911
      %v913 = vpop.f32.mrf.mxu0
      %v914 = vpop.f32.mrf.mxu0
      %v915 = vadd.f32 %v779, %v914
      %v916 = vpop.f32.mrf.mxu0
      %917 = vmatprep.mubr.bf16.mxu0 0
      %918 = vmatmul.mubr.bf16.gmra.mxu0 %v746
      %v919 = vpop.f32.mrf.mxu0
      %v920 = vadd.f32 %v779, %v919
      %v921 = vpop.f32.mrf.mxu0
      %v922 = vpop.f32.mrf.mxu0
      %v923 = vadd.f32 %v779, %v922
      %v924 = vpop.f32.mrf.mxu0
      %925 = vmatprep.mubr.bf16.mxu0 0
      %926 = vmatmul.mubr.bf16.gmra.mxu0 %v747
      %v927 = vpop.f32.mrf.mxu0
      %v928 = vadd.f32 %v779, %v927
      %v929 = vpop.f32.mrf.mxu0
      %v930 = vpop.f32.mrf.mxu0
      %v931 = vadd.f32 %v779, %v930
      %v932 = vpop.f32.mrf.mxu0
      %933 = vmatprep.mubr.bf16.mxu0 0
      %934 = vmatmul.mubr.bf16.gmra.mxu0 %v748
      %v935 = vpop.f32.mrf.mxu0
      %v936 = vadd.f32 %v779, %v935
      %v937 = vpop.f32.mrf.mxu0
      %v938 = vpop.f32.mrf.mxu0
      %v939 = vadd.f32 %v779, %v938
      %v940 = vpop.f32.mrf.mxu0
      %941 = vmatprep.mubr.bf16.mxu0 0
      %942 = vmatmul.mubr.bf16.gmra.mxu0 %v749
      %v943 = vpop.f32.mrf.mxu0
      %v944 = vadd.f32 %v779, %v943
      %v945 = vpop.f32.mrf.mxu0
      %v946 = vpop.f32.mrf.mxu0
      %v947 = vadd.f32 %v779, %v946
      %v948 = vpop.f32.mrf.mxu0
      %949 = vmatprep.mubr.bf16.mxu0 0
      %950 = vmatmul.mubr.bf16.gmra.mxu0 %v750
      %v951 = vpop.f32.mrf.mxu0
      %v952 = vadd.f32 %v779, %v951
      %v953 = vpop.f32.mrf.mxu0
      %v954 = vpop.f32.mrf.mxu0
      %v955 = vadd.f32 %v779, %v954
      %v956 = vpop.f32.mrf.mxu0
      %957 = vmatprep.mubr.bf16.mxu0 0
      %958 = vmatmul.mubr.bf16.gmra.mxu0 %v751
      %v959 = vpop.f32.mrf.mxu0
      %v960 = vadd.f32 %v779, %v959
      %v961 = vpop.f32.mrf.mxu0
      %v962 = vpop.f32.mrf.mxu0
      %v963 = vadd.f32 %v779, %v962
      %v964 = vpop.f32.mrf.mxu0
      %965 = vmatprep.mubr.bf16.mxu0 0
      %966 = vmatmul.mubr.bf16.gmra.mxu0 %v752
      %v967 = vpop.f32.mrf.mxu0
      %v968 = vadd.f32 %v779, %v967
      %v969 = vpop.f32.mrf.mxu0
      %v970 = vpop.f32.mrf.mxu0
      %v971 = vadd.f32 %v779, %v970
      %v972 = vpop.f32.mrf.mxu0
      %973 = vmatprep.mubr.bf16.mxu0 0
      %974 = vmatmul.mubr.bf16.gmra.mxu0 %v753
      %v975 = vpop.f32.mrf.mxu0
      %v976 = vadd.f32 %v779, %v975
      %v977 = vpop.f32.mrf.mxu0
      %v978 = vpop.f32.mrf.mxu0
      %v979 = vadd.f32 %v779, %v978
      %v980 = vpop.f32.mrf.mxu0
      %981 = vmatprep.mubr.bf16.mxu0 0
      %982 = vmatmul.mubr.bf16.gmra.mxu0 %v754
      %v983 = vpop.f32.mrf.mxu0
      %v984 = vadd.f32 %v779, %v983
      %v985 = vpop.f32.mrf.mxu0
      %v986 = vpop.f32.mrf.mxu0
      %v987 = vadd.f32 %v779, %v986
      %v988 = vpop.f32.mrf.mxu0
      %989 = vdwg.mxu0
      %v990 = vadd.f32 %v407, %v864
      %v991 = vadd.f32 %v408, %v867
      %v992 = vadd.f32 %v409, %v872
      %v993 = vadd.f32 %v410, %v875
      %v994 = vadd.f32 %v411, %v880
      %v995 = vadd.f32 %v412, %v883
      %v996 = vadd.f32 %v413, %v888
      %v997 = vadd.f32 %v414, %v891
      %v998 = vadd.f32 %v415, %v896
      %v999 = vadd.f32 %v416, %v899
      %v1000 = vadd.f32 %v417, %v904
      %v1001 = vadd.f32 %v418, %v907
      %v1002 = vadd.f32 %v419, %v912
      %v1003 = vadd.f32 %v420, %v915
      %v1004 = vadd.f32 %v421, %v920
      %v1005 = vadd.f32 %v422, %v923
      %v1006 = vadd.f32 %v423, %v928
      %v1007 = vadd.f32 %v424, %v931
      %v1008 = vadd.f32 %v425, %v936
      %v1009 = vadd.f32 %v426, %v939
      %v1010 = vadd.f32 %v427, %v944
      %v1011 = vadd.f32 %v428, %v947
      %v1012 = vadd.f32 %v429, %v952
      %v1013 = vadd.f32 %v430, %v955
      %v1014 = vadd.f32 %v431, %v960
      %v1015 = vadd.f32 %v432, %v963
      %v1016 = vadd.f32 %v433, %v968
      %v1017 = vadd.f32 %v434, %v971
      %v1018 = vadd.f32 %v435, %v976
      %v1019 = vadd.f32 %v436, %v979
      %v1020 = vadd.f32 %v437, %v984
      %v1021 = vadd.f32 %v438, %v987
    $region42: #{_decoder_forward.1} parent=1 // loop_footer
      %s406 = sadd.s32 1, %s402
    $region43: #{_decoder_forward.1} parent=1 // loop_footer_branch
      %401 = sbr.rel target = $region39
    $region44: #{_decoder_forward.1} parent=1 // loop_exit
      _
    %v1022 = vmax.f32 %v407, 0.0
    %v1023 = vmax.f32 %v408, 0.0
    %v1024 = vmax.f32 %v409, 0.0
    %v1025 = vmax.f32 %v410, 0.0
    %v1026 = vmax.f32 %v411, 0.0
    %v1027 = vmax.f32 %v412, 0.0
    %v1028 = vmax.f32 %v413, 0.0
    %v1029 = vmax.f32 %v414, 0.0
    %v1030 = vmax.f32 %v415, 0.0
    %v1031 = vmax.f32 %v416, 0.0
    %v1032 = vmax.f32 %v417, 0.0
    %v1033 = vmax.f32 %v418, 0.0
    %v1034 = vmax.f32 %v419, 0.0
    %v1035 = vmax.f32 %v420, 0.0
    %v1036 = vmax.f32 %v421, 0.0
    %v1037 = vmax.f32 %v422, 0.0
    %v1038 = vmax.f32 %v423, 0.0
    %v1039 = vmax.f32 %v424, 0.0
    %v1040 = vmax.f32 %v425, 0.0
    %v1041 = vmax.f32 %v426, 0.0
    %v1042 = vmax.f32 %v427, 0.0
    %v1043 = vmax.f32 %v428, 0.0
    %v1044 = vmax.f32 %v429, 0.0
    %v1045 = vmax.f32 %v430, 0.0
    %v1046 = vmax.f32 %v431, 0.0
    %v1047 = vmax.f32 %v432, 0.0
    %v1048 = vmax.f32 %v433, 0.0
    %v1049 = vmax.f32 %v434, 0.0
    %v1050 = vmax.f32 %v435, 0.0
    %v1051 = vmax.f32 %v436, 0.0
    %v1052 = vmax.f32 %v437, 0.0
    %v1053 = vmax.f32 %v438, 0.0
    %v1054 = vpack.c.bf16 %v1023, %v1022
    %v1055 = vpack.c.bf16 %v1025, %v1024
    %v1056 = vpack.c.bf16 %v1027, %v1026
    %v1057 = vpack.c.bf16 %v1029, %v1028
    %v1058 = vpack.c.bf16 %v1031, %v1030
    %v1059 = vpack.c.bf16 %v1033, %v1032
    %v1060 = vpack.c.bf16 %v1035, %v1034
    %v1061 = vpack.c.bf16 %v1037, %v1036
    %v1062 = vpack.c.bf16 %v1039, %v1038
    %v1063 = vpack.c.bf16 %v1041, %v1040
    %v1064 = vpack.c.bf16 %v1043, %v1042
    %v1065 = vpack.c.bf16 %v1045, %v1044
    %v1066 = vpack.c.bf16 %v1047, %v1046
    %v1067 = vpack.c.bf16 %v1049, %v1048
    %v1068 = vpack.c.bf16 %v1051, %v1050
    %v1069 = vpack.c.bf16 %v1053, %v1052
    %v1070 = vld [vmem:[%s6] sm:$0xf]
    %v1071 = vld [vmem:[%s6 + $0x4] sm:$0xf]
    %v1072 = vld [vmem:[%s6 + $0x8] sm:$0xf]
    %v1073 = vld [vmem:[%s6 + $0xc] sm:$0xf]
    %v1074 = vld [vmem:[%s6 + $0x10] sm:$0xf]
    %v1075 = vld [vmem:[%s6 + $0x14] sm:$0xf]
    %v1076 = vld [vmem:[%s6 + $0x18] sm:$0xf]
    %v1077 = vld [vmem:[%s6 + $0x1c] sm:$0xf]
    %v1078 = vld [vmem:[%s6 + $0x20] sm:$0xf]
    %v1079 = vld [vmem:[%s6 + $0x24] sm:$0xf]
    %v1080 = vld [vmem:[%s6 + $0x28] sm:$0xf]
    %v1081 = vld [vmem:[%s6 + $0x2c] sm:$0xf]
    %v1082 = vld [vmem:[%s6 + $0x30] sm:$0xf]
    %v1083 = vld [vmem:[%s6 + $0x34] sm:$0xf]
    %v1084 = vld [vmem:[%s6 + $0x38] sm:$0xf]
    %v1085 = vld [vmem:[%s6 + $0x3c] sm:$0xf]
    %v1102 = vunpack.c.l.b16 %v1070
    %v1103 = vunpack.c.l.b16 %v1071
    %v1104 = vunpack.c.l.b16 %v1072
    %v1105 = vunpack.c.l.b16 %v1073
    %v1106 = vunpack.c.l.b16 %v1074
    %v1107 = vunpack.c.l.b16 %v1075
    %v1108 = vunpack.c.l.b16 %v1076
    %v1109 = vunpack.c.l.b16 %v1077
    %v1110 = vunpack.c.l.b16 %v1078
    %v1111 = vunpack.c.l.b16 %v1079
    %v1112 = vunpack.c.l.b16 %v1080
    %v1113 = vunpack.c.l.b16 %v1081
    %v1114 = vunpack.c.l.b16 %v1082
    %v1115 = vunpack.c.l.b16 %v1083
    %v1116 = vunpack.c.l.b16 %v1084
    %v1117 = vunpack.c.l.b16 %v1085
    %v1118 = vpack.c.b16 %v1103, %v1102
    %v1119 = vpack.c.b16 %v1105, %v1104
    %v1120 = vpack.c.b16 %v1107, %v1106
    %v1121 = vpack.c.b16 %v1109, %v1108
    %v1122 = vpack.c.b16 %v1111, %v1110
    %v1123 = vpack.c.b16 %v1113, %v1112
    %v1124 = vpack.c.b16 %v1115, %v1114
    %v1125 = vpack.c.b16 %v1117, %v1116
    %1134 = vmatprep.subr.bf16.mxu0 0
    %1135 = vmatpush1.bf16.msra.mxu0 %v1125
    %1136 = vmatprep.subr.bf16.mxu0 0
    %1137 = vmatpush1.bf16.msra.mxu0 %v1124
    %1138 = vmatprep.subr.bf16.mxu0 0
    %1139 = vmatpush1.bf16.msra.mxu0 %v1123
    %1140 = vmatprep.subr.bf16.mxu0 0
    %1141 = vmatpush1.bf16.msra.mxu0 %v1122
    %1142 = vmatprep.subr.bf16.mxu0 0
    %1143 = vmatpush1.bf16.msra.mxu0 %v1121
    %1144 = vmatprep.subr.bf16.mxu0 0
    %1145 = vmatpush1.bf16.msra.mxu0 %v1120
    %1146 = vmatprep.subr.bf16.mxu0 0
    %1147 = vmatpush1.bf16.msra.mxu0 %v1119
    %1148 = vmatprep.subr.bf16.mxu0 0
    %1149 = vmatpush1.bf16.msra.mxu0 %v1118
    %1150 = vmatprep.subr.bf16.mxu0 0
    %1151 = vmatpush2.bf16.msra.mxu0 0
    %1152 = vmatprep.subr.bf16.mxu0 0
    %1153 = vmatpush2.bf16.msra.mxu0 0
    %1154 = vmatprep.subr.bf16.mxu0 0
    %1155 = vmatpush2.bf16.msra.mxu0 0
    %1156 = vmatprep.subr.bf16.mxu0 0
    %1157 = vmatpush2.bf16.msra.mxu0 0
    %1158 = vmatprep.subr.bf16.mxu0 0
    %1159 = vmatpush2.bf16.msra.mxu0 0
    %1160 = vmatprep.subr.bf16.mxu0 0
    %1161 = vmatpush2.bf16.msra.mxu0 0
    %1162 = vmatprep.subr.bf16.mxu0 0
    %1163 = vmatpush2.bf16.msra.mxu0 0
    %1164 = vmatprep.subr.bf16.mxu0 0
    %1165 = vmatpush2.bf16.msra.mxu0 0
    %1166 = vmatprep.mubr.bf16.mxu0 0
    %1167 = vmatmul.mubr.bf16.gmra.mxu0 %v1054
    %v1168 = vpop.f32.mrf.mxu0
    %v1169 = vadd.f32 0.0, %v1168
    %v1170 = vpop.f32.mrf.mxu0
    %v1171 = vpop.f32.mrf.mxu0
    %v1172 = vadd.f32 0.0, %v1171
    %v1173 = vpop.f32.mrf.mxu0
    %1174 = vmatprep.mubr.bf16.mxu0 0
    %1175 = vmatmul.mubr.bf16.gmra.mxu0 %v1055
    %v1176 = vpop.f32.mrf.mxu0
    %v1177 = vadd.f32 0.0, %v1176
    %v1178 = vpop.f32.mrf.mxu0
    %v1179 = vpop.f32.mrf.mxu0
    %v1180 = vadd.f32 0.0, %v1179
    %v1181 = vpop.f32.mrf.mxu0
    %1182 = vmatprep.mubr.bf16.mxu0 0
    %1183 = vmatmul.mubr.bf16.gmra.mxu0 %v1056
    %v1184 = vpop.f32.mrf.mxu0
    %v1185 = vadd.f32 0.0, %v1184
    %v1186 = vpop.f32.mrf.mxu0
    %v1187 = vpop.f32.mrf.mxu0
    %v1188 = vadd.f32 0.0, %v1187
    %v1189 = vpop.f32.mrf.mxu0
    %1190 = vmatprep.mubr.bf16.mxu0 0
    %1191 = vmatmul.mubr.bf16.gmra.mxu0 %v1057
    %v1192 = vpop.f32.mrf.mxu0
    %v1193 = vadd.f32 0.0, %v1192
    %v1194 = vpop.f32.mrf.mxu0
    %v1195 = vpop.f32.mrf.mxu0
    %v1196 = vadd.f32 0.0, %v1195
    %v1197 = vpop.f32.mrf.mxu0
    %1198 = vmatprep.mubr.bf16.mxu0 0
    %1199 = vmatmul.mubr.bf16.gmra.mxu0 %v1058
    %v1200 = vpop.f32.mrf.mxu0
    %v1201 = vadd.f32 0.0, %v1200
    %v1202 = vpop.f32.mrf.mxu0
    %v1203 = vpop.f32.mrf.mxu0
    %v1204 = vadd.f32 0.0, %v1203
    %v1205 = vpop.f32.mrf.mxu0
    %1206 = vmatprep.mubr.bf16.mxu0 0
    %1207 = vmatmul.mubr.bf16.gmra.mxu0 %v1059
    %v1208 = vpop.f32.mrf.mxu0
    %v1209 = vadd.f32 0.0, %v1208
    %v1210 = vpop.f32.mrf.mxu0
    %v1211 = vpop.f32.mrf.mxu0
    %v1212 = vadd.f32 0.0, %v1211
    %v1213 = vpop.f32.mrf.mxu0
    %1214 = vmatprep.mubr.bf16.mxu0 0
    %1215 = vmatmul.mubr.bf16.gmra.mxu0 %v1060
    %v1216 = vpop.f32.mrf.mxu0
    %v1217 = vadd.f32 0.0, %v1216
    %v1218 = vpop.f32.mrf.mxu0
    %v1219 = vpop.f32.mrf.mxu0
    %v1220 = vadd.f32 0.0, %v1219
    %v1221 = vpop.f32.mrf.mxu0
    %1222 = vmatprep.mubr.bf16.mxu0 0
    %1223 = vmatmul.mubr.bf16.gmra.mxu0 %v1061
    %v1224 = vpop.f32.mrf.mxu0
    %v1225 = vadd.f32 0.0, %v1224
    %v1226 = vpop.f32.mrf.mxu0
    %v1227 = vpop.f32.mrf.mxu0
    %v1228 = vadd.f32 0.0, %v1227
    %v1229 = vpop.f32.mrf.mxu0
    %1230 = vmatprep.mubr.bf16.mxu0 0
    %1231 = vmatmul.mubr.bf16.gmra.mxu0 %v1062
    %v1232 = vpop.f32.mrf.mxu0
    %v1233 = vadd.f32 0.0, %v1232
    %v1234 = vpop.f32.mrf.mxu0
    %v1235 = vpop.f32.mrf.mxu0
    %v1236 = vadd.f32 0.0, %v1235
    %v1237 = vpop.f32.mrf.mxu0
    %1238 = vmatprep.mubr.bf16.mxu0 0
    %1239 = vmatmul.mubr.bf16.gmra.mxu0 %v1063
    %v1240 = vpop.f32.mrf.mxu0
    %v1241 = vadd.f32 0.0, %v1240
    %v1242 = vpop.f32.mrf.mxu0
    %v1243 = vpop.f32.mrf.mxu0
    %v1244 = vadd.f32 0.0, %v1243
    %v1245 = vpop.f32.mrf.mxu0
    %1246 = vmatprep.mubr.bf16.mxu0 0
    %1247 = vmatmul.mubr.bf16.gmra.mxu0 %v1064
    %v1248 = vpop.f32.mrf.mxu0
    %v1249 = vadd.f32 0.0, %v1248
    %v1250 = vpop.f32.mrf.mxu0
    %v1251 = vpop.f32.mrf.mxu0
    %v1252 = vadd.f32 0.0, %v1251
    %v1253 = vpop.f32.mrf.mxu0
    %1254 = vmatprep.mubr.bf16.mxu0 0
    %1255 = vmatmul.mubr.bf16.gmra.mxu0 %v1065
    %v1256 = vpop.f32.mrf.mxu0
    %v1257 = vadd.f32 0.0, %v1256
    %v1258 = vpop.f32.mrf.mxu0
    %v1259 = vpop.f32.mrf.mxu0
    %v1260 = vadd.f32 0.0, %v1259
    %v1261 = vpop.f32.mrf.mxu0
    %1262 = vmatprep.mubr.bf16.mxu0 0
    %1263 = vmatmul.mubr.bf16.gmra.mxu0 %v1066
    %v1264 = vpop.f32.mrf.mxu0
    %v1265 = vadd.f32 0.0, %v1264
    %v1266 = vpop.f32.mrf.mxu0
    %v1267 = vpop.f32.mrf.mxu0
    %v1268 = vadd.f32 0.0, %v1267
    %v1269 = vpop.f32.mrf.mxu0
    %1270 = vmatprep.mubr.bf16.mxu0 0
    %1271 = vmatmul.mubr.bf16.gmra.mxu0 %v1067
    %v1272 = vpop.f32.mrf.mxu0
    %v1273 = vadd.f32 0.0, %v1272
    %v1274 = vpop.f32.mrf.mxu0
    %v1275 = vpop.f32.mrf.mxu0
    %v1276 = vadd.f32 0.0, %v1275
    %v1277 = vpop.f32.mrf.mxu0
    %1278 = vmatprep.mubr.bf16.mxu0 0
    %1279 = vmatmul.mubr.bf16.gmra.mxu0 %v1068
    %v1280 = vpop.f32.mrf.mxu0
    %v1281 = vadd.f32 0.0, %v1280
    %v1282 = vpop.f32.mrf.mxu0
    %v1283 = vpop.f32.mrf.mxu0
    %v1284 = vadd.f32 0.0, %v1283
    %v1285 = vpop.f32.mrf.mxu0
    %1286 = vmatprep.mubr.bf16.mxu0 0
    %1287 = vmatmul.mubr.bf16.gmra.mxu0 %v1069
    %v1288 = vpop.f32.mrf.mxu0
    %v1289 = vadd.f32 0.0, %v1288
    %v1290 = vpop.f32.mrf.mxu0
    %v1291 = vpop.f32.mrf.mxu0
    %v1292 = vadd.f32 0.0, %v1291
    %v1293 = vpop.f32.mrf.mxu0
    %1294 = vdwg.mxu0
    %v1295 = vld [vmem:[#allocation2] sm:$0x1]
    %v1297 = vlaneseq
    %v1298 = vshrl.u32 %v1297, 7
    %v1299 = vsub.s32 0, %v1298
    %v1300 = vrot.slane %v1295, %v1299
    %v1302 = vadd.f32 %v1169, %v1300
    %v1303 = vadd.f32 %v1172, %v1300
    %v1304 = vadd.f32 %v1177, %v1300
    %v1305 = vadd.f32 %v1180, %v1300
    %v1306 = vadd.f32 %v1185, %v1300
    %v1307 = vadd.f32 %v1188, %v1300
    %v1308 = vadd.f32 %v1193, %v1300
    %v1309 = vadd.f32 %v1196, %v1300
    %v1310 = vadd.f32 %v1201, %v1300
    %v1311 = vadd.f32 %v1204, %v1300
    %v1312 = vadd.f32 %v1209, %v1300
    %v1313 = vadd.f32 %v1212, %v1300
    %v1314 = vadd.f32 %v1217, %v1300
    %v1315 = vadd.f32 %v1220, %v1300
    %v1316 = vadd.f32 %v1225, %v1300
    %v1317 = vadd.f32 %v1228, %v1300
    %v1318 = vadd.f32 %v1233, %v1300
    %v1319 = vadd.f32 %v1236, %v1300
    %v1320 = vadd.f32 %v1241, %v1300
    %v1321 = vadd.f32 %v1244, %v1300
    %v1322 = vadd.f32 %v1249, %v1300
    %v1323 = vadd.f32 %v1252, %v1300
    %v1324 = vadd.f32 %v1257, %v1300
    %v1325 = vadd.f32 %v1260, %v1300
    %v1326 = vadd.f32 %v1265, %v1300
    %v1327 = vadd.f32 %v1268, %v1300
    %v1328 = vadd.f32 %v1273, %v1300
    %v1329 = vadd.f32 %v1276, %v1300
    %v1330 = vadd.f32 %v1281, %v1300
    %v1331 = vadd.f32 %v1284, %v1300
    %v1332 = vadd.f32 %v1289, %v1300
    %v1333 = vadd.f32 %v1292, %v1300
    %vm1334 = vcmask 7168
    %1335 = vst.msk [vmem:[%s8] sm:$0xff] %vm1334, %v1302
    %1336 = vst.msk [vmem:[%s8 + $0x8] sm:$0xff] %vm1334, %v1303
    %1337 = vst.msk [vmem:[%s8 + $0x10] sm:$0xff] %vm1334, %v1304
    %1338 = vst.msk [vmem:[%s8 + $0x18] sm:$0xff] %vm1334, %v1305
    %1339 = vst.msk [vmem:[%s8 + $0x20] sm:$0xff] %vm1334, %v1306
    %1340 = vst.msk [vmem:[%s8 + $0x28] sm:$0xff] %vm1334, %v1307
    %1341 = vst.msk [vmem:[%s8 + $0x30] sm:$0xff] %vm1334, %v1308
    %1342 = vst.msk [vmem:[%s8 + $0x38] sm:$0xff] %vm1334, %v1309
    %1343 = vst.msk [vmem:[%s8 + $0x40] sm:$0xff] %vm1334, %v1310
    %1344 = vst.msk [vmem:[%s8 + $0x48] sm:$0xff] %vm1334, %v1311
    %1345 = vst.msk [vmem:[%s8 + $0x50] sm:$0xff] %vm1334, %v1312
    %1346 = vst.msk [vmem:[%s8 + $0x58] sm:$0xff] %vm1334, %v1313
    %1347 = vst.msk [vmem:[%s8 + $0x60] sm:$0xff] %vm1334, %v1314
    %1348 = vst.msk [vmem:[%s8 + $0x68] sm:$0xff] %vm1334, %v1315
    %1349 = vst.msk [vmem:[%s8 + $0x70] sm:$0xff] %vm1334, %v1316
    %1350 = vst.msk [vmem:[%s8 + $0x78] sm:$0xff] %vm1334, %v1317
    %1351 = vst.msk [vmem:[%s8 + $0x80] sm:$0xff] %vm1334, %v1318
    %1352 = vst.msk [vmem:[%s8 + $0x88] sm:$0xff] %vm1334, %v1319
    %1353 = vst.msk [vmem:[%s8 + $0x90] sm:$0xff] %vm1334, %v1320
    %1354 = vst.msk [vmem:[%s8 + $0x98] sm:$0xff] %vm1334, %v1321
    %1355 = vst.msk [vmem:[%s8 + $0xa0] sm:$0xff] %vm1334, %v1322
    %1356 = vst.msk [vmem:[%s8 + $0xa8] sm:$0xff] %vm1334, %v1323
    %1357 = vst.msk [vmem:[%s8 + $0xb0] sm:$0xff] %vm1334, %v1324
    %1358 = vst.msk [vmem:[%s8 + $0xb8] sm:$0xff] %vm1334, %v1325
    %1359 = vst.msk [vmem:[%s8 + $0xc0] sm:$0xff] %vm1334, %v1326
    %1360 = vst.msk [vmem:[%s8 + $0xc8] sm:$0xff] %vm1334, %v1327
    %1361 = vst.msk [vmem:[%s8 + $0xd0] sm:$0xff] %vm1334, %v1328
    %1362 = vst.msk [vmem:[%s8 + $0xd8] sm:$0xff] %vm1334, %v1329
    %1363 = vst.msk [vmem:[%s8 + $0xe0] sm:$0xff] %vm1334, %v1330
    %1364 = vst.msk [vmem:[%s8 + $0xe8] sm:$0xff] %vm1334, %v1331
    %1365 = vst.msk [vmem:[%s8 + $0xf0] sm:$0xff] %vm1334, %v1332
    %1366 = vst.msk [vmem:[%s8 + $0xf8] sm:$0xff] %vm1334, %v1333
    // Predicated region
    $region45: #{_decoder_forward.1} parent=1 // pred_check
      _
    $region46: #{_decoder_forward.1} parent=1 // pred_check_branch
      %1368 = sbr.rel (0) target = $region48
    $region47: #{_decoder_forward.1} parent=1 // pred_region
      _
    $region48: #{_decoder_forward.1} parent=1 // pred_fallthru
      _
    // Predicated region
    $region49: #{_decoder_forward.1} parent=1 // pred_check
      _
    $region50: #{_decoder_forward.1} parent=1 // pred_check_branch
      %1370 = sbr.rel (0) target = $region52
    $region51: #{_decoder_forward.1} parent=1 // pred_region
      _
    $region52: #{_decoder_forward.1} parent=1 // pred_fallthru
      _
    %1371 = vsyncpa [#allocation4], 1

</llo_original>
